<compile_context>
chip_gen: v7x
topology: tpu7x:2x2x1
jax: 0.10.0
libtpu: 0.0.40
codegen_flags: <defaults>
</compile_context>

<pallas_src>
import math
from functools import partial

import jax
import jax.numpy as jnp
from jax.experimental import pallas as pl
from jax.experimental.pallas import tpu as pltpu


# --------------------------------------------------------------------------- #
# Fused FINER MLP kernel (one row-tile of tm pixels per grid step).
# --------------------------------------------------------------------------- #
def _finer_mlp_kernel(first_omega, hidden_omega, n_hidden,
                      coords_ref, w1_ref, b1_ref, *rest):
    """Channel-major fused FINER MLP.

    coords_ref : (2, tm)                  f32   lane-dense pixel coordinates
    w1_ref     : (hidden, 2)              f32   first FINER weight (PyTorch (out, in) layout)
    b1_ref     : (hidden, 1)              f32
    rest       : [wh (n_hidden, H, H) bf16, bh (n_hidden, H, 1) f32,]   (if n_hidden > 0)
                 wf (c_out, H) bf16, bf (c_out, 1) f32, o_ref (c_out, tm) f32
    """
    if n_hidden > 0:
        wh_ref, bh_ref, wf_ref, bf_ref, o_ref = rest
    else:
        wf_ref, bf_ref, o_ref = rest

    c = coords_ref[...]                       # (2, tm) f32
    w1 = w1_ref[...]                          # (hidden, 2) f32
    b1 = b1_ref[...]                          # (hidden, 1) f32

    # First FINER layer: K = 2 -> two exact f32 VPU broadcast-FMAs (skip a degenerate
    # MXU matmul).  Broadcasts happen once per tile.
    z = w1[:, 0:1] * c[0:1, :] + w1[:, 1:2] * c[1:2, :] + b1          # (hidden, tm)
    a = jnp.sin(first_omega * (jnp.abs(z) + 1.0) * z)

    # Hidden FINER layers: single-pass bf16 MXU matmuls, f32 accumulation (explicitly
    # pinned); the FINER epilogue (abs / scale / sin) stays in f32 for v5e portability.
    for layer in range(n_hidden):
        w = wh_ref[layer]                     # (hidden, hidden) bf16
        b = bh_ref[layer]                     # (hidden, 1) f32
        z = jnp.dot(w, a.astype(jnp.bfloat16), preferred_element_type=jnp.float32) + b
        a = jnp.sin(hidden_omega * (jnp.abs(z) + 1.0) * z)

    # Final plain linear, written lane-dense as (out_channels, tm).
    o_ref[...] = (jnp.dot(wf_ref[...], a.astype(jnp.bfloat16),
                          preferred_element_type=jnp.float32) + bf_ref[...])


# --------------------------------------------------------------------------- #
# Parameter init (mimics FINER's torch init; weights stored as (out, in), bias (out, 1)).
# --------------------------------------------------------------------------- #
def init_finer_params(key, in_channels, out_channels, hidden_channels, hidden_layers,
                      first_omega_0=30.0, hidden_omega_0=30.0, first_bias_scale=None):
    def uniform(k, shape, bound):
        return jax.random.uniform(k, shape, jnp.float32, -bound, bound)

    params = []
    keys = jax.random.split(key, hidden_layers + 2)

    # First FINER layer: weight ~ U(-1/in, 1/in); bias default Linear init unless
    # first_bias_scale is given (then U(-fbs, fbs)).
    kw, kb = jax.random.split(keys[0])
    w = uniform(kw, (hidden_channels, in_channels), 1.0 / in_channels)
    b_bound = first_bias_scale if first_bias_scale is not None else 1.0 / math.sqrt(in_channels)
    params.append((w, uniform(kb, (hidden_channels, 1), b_bound)))

    # Hidden FINER layers and final linear: weight ~ U(-sqrt(6/fan_in)/omega, +...).
    w_bound = math.sqrt(6.0 / hidden_channels) / hidden_omega_0
    b_bound = 1.0 / math.sqrt(hidden_channels)
    for layer in range(hidden_layers):
        kw, kb = jax.random.split(keys[1 + layer])
        params.append((uniform(kw, (hidden_channels, hidden_channels), w_bound),
                       uniform(kb, (hidden_channels, 1), b_bound)))

    kw, kb = jax.random.split(keys[-1])
    params.append((uniform(kw, (out_channels, hidden_channels), w_bound),
                   uniform(kb, (out_channels, 1), b_bound)))
    return params


# --------------------------------------------------------------------------- #
# FINER forward (single fused pallas_call over row tiles of the coordinate grid).
# --------------------------------------------------------------------------- #
def finer_forward(image, params, *, first_omega_0=30.0, hidden_omega_0=30.0, tm=8192):
    h, w = int(image.shape[-2]), int(image.shape[-1])
    n = h * w
    hidden = int(params[0][0].shape[0])
    c_in = int(params[0][0].shape[1])
    c_out = int(params[-1][0].shape[0])
    n_hidden = len(params) - 2

    # Lane-dense transposed coords (2, N), row-major over (w, h), exactly matching
    # np.dstack(np.meshgrid(linspace(0,1,h), linspace(0,1,w))).reshape(-1, 2).T
    # (np.meshgrid and jnp.meshgrid both default to indexing='xy').
    xs = jnp.linspace(0.0, 1.0, h, dtype=jnp.float32)
    ys = jnp.linspace(0.0, 1.0, w, dtype=jnp.float32)
    gx, gy = jnp.meshgrid(xs, ys)                                   # each (w, h)
    coords_t = jnp.stack([gx.reshape(-1), gy.reshape(-1)], axis=0)  # (2, N)

    # Row tile: multiple of 128 lanes, capped by problem size; pad rows (sliced off later).
    # Default 8192 amortizes per-grid-step overhead; working set stays a few MiB even on
    # v5e/v7x (sweep 4096-16384 if tuning).
    tm = pl.cdiv(int(tm), 128) * 128
    tm = max(128, min(tm, pl.cdiv(n, 128) * 128))
    n_pad = pl.cdiv(n, tm) * tm
    if n_pad != n:
        coords_t = jnp.pad(coords_t, ((0, 0), (0, n_pad - n)))
    grid = (n_pad // tm,)

    # Pack parameters: first layer stays f32 (exact VPU path); hidden stack + final weight
    # are pre-cast to bf16 (single-pass MXU operands); all biases stay f32.
    w1 = params[0][0].astype(jnp.float32)
    b1 = params[0][1].astype(jnp.float32)
    wf = params[-1][0].astype(jnp.bfloat16)
    bf = params[-1][1].astype(jnp.float32)

    inputs = [coords_t, w1, b1]
    in_specs = [
        pl.BlockSpec((c_in, tm), lambda i: (0, i)),                 # coords row tile
        pl.BlockSpec((hidden, c_in), lambda i: (0, 0)),             # full weight, VMEM-resident
        pl.BlockSpec((hidden, 1), lambda i: (0, 0)),
    ]
    if n_hidden > 0:
        wh = jnp.stack([p[0] for p in params[1:-1]], axis=0).astype(jnp.bfloat16)
        bh = jnp.stack([p[1] for p in params[1:-1]], axis=0).astype(jnp.float32)
        inputs += [wh, bh]
        in_specs += [
            pl.BlockSpec((n_hidden, hidden, hidden), lambda i: (0, 0, 0)),
            pl.BlockSpec((n_hidden, hidden, 1), lambda i: (0, 0, 0)),
        ]
    inputs += [wf, bf]
    in_specs += [
        pl.BlockSpec((c_out, hidden), lambda i: (0, 0)),
        pl.BlockSpec((c_out, 1), lambda i: (0, 0)),
    ]

    # Advisory cost hint for the XLA scheduler (documents the roofline).
    flops = 2 * n_pad * (hidden * c_in + n_hidden * hidden * hidden + hidden * c_out)
    transcendentals = n_pad * hidden * (n_hidden + 1)
    bytes_accessed = (4 * n_pad * (c_in + c_out)
                      + sum(int(a.size) * int(a.dtype.itemsize) for a in inputs[1:]))

    kernel = partial(_finer_mlp_kernel, float(first_omega_0), float(hidden_omega_0), n_hidden)

    out_t = pl.pallas_call(
        kernel,
        out_shape=jax.ShapeDtypeStruct((c_out, n_pad), jnp.float32),
        grid=grid,
        in_specs=in_specs,
        out_specs=pl.BlockSpec((c_out, tm), lambda i: (0, i)),
        compiler_params=pltpu.CompilerParams(
            dimension_semantics=("parallel",),       # megacore shards row tiles on v7x
            vmem_limit_bytes=32 * 1024 * 1024,       # headroom for large tm on v5e's 16 MiB default
        ),
        cost_estimate=pl.CostEstimate(flops=flops, transcendentals=transcendentals,
                                      bytes_accessed=bytes_accessed),
    )(*inputs)

    # Back to the PyTorch output layout: (w, h, out_channels).  Kept in the wrapper on
    # purpose: a (tm, 3) kernel output block would force masked 3-lane stores.
    return out_t[:, :n].T.reshape(w, h, c_out)


# --------------------------------------------------------------------------- #
# Pure-JAX reference (mirrors the kernel math, incl. bf16 MXU operands / f32 accumulation).
# --------------------------------------------------------------------------- #
def finer_forward_reference(image, params, *, first_omega_0=30.0, hidden_omega_0=30.0):
    h, w = int(image.shape[-2]), int(image.shape[-1])
    xs = jnp.linspace(0.0, 1.0, h, dtype=jnp.float32)
    ys = jnp.linspace(0.0, 1.0, w, dtype=jnp.float32)
    gx, gy = jnp.meshgrid(xs, ys)
    coords = jnp.stack([gx, gy], axis=-1).reshape(-1, 2)            # (N, 2)

    w1, b1 = params[0]
    z = (coords[:, 0:1] * w1[:, 0].reshape(1, -1)
         + coords[:, 1:2] * w1[:, 1].reshape(1, -1) + b1.reshape(1, -1))
    x = jnp.sin(first_omega_0 * (jnp.abs(z) + 1.0) * z)
    for (wgt, bias) in params[1:-1]:
        z = jnp.dot(x.astype(jnp.bfloat16), wgt.astype(jnp.bfloat16).T,
                    preferred_element_type=jnp.float32) + bias.reshape(1, -1)
        x = jnp.sin(hidden_omega_0 * (jnp.abs(z) + 1.0) * z)
    wgt, bias = params[-1]
    x = jnp.dot(x.astype(jnp.bfloat16), wgt.astype(jnp.bfloat16).T,
                preferred_element_type=jnp.float32) + bias.reshape(1, -1)
    return x.reshape(w, h, -1)


# --------------------------------------------------------------------------- #
if __name__ == "__main__":
    key = jax.random.PRNGKey(0)
    k_img, k_param = jax.random.split(key)

    in_channels = 2          # coordinate dimensionality consumed by the net
    out_channels = 3
    hidden_channels = 32
    hidden_layers = 2
    first_omega_0 = 30.0
    hidden_omega_0 = 30.0

    # NCHW image; only its spatial size (H, W) is used by FINER.forward.
    image = jax.random.normal(k_img, (2, 3, 16, 16), dtype=jnp.float32)

    params = init_finer_params(k_param, in_channels, out_channels, hidden_channels,
                               hidden_layers, first_omega_0, hidden_omega_0)

    out = finer_forward(image, params,
                        first_omega_0=first_omega_0, hidden_omega_0=hidden_omega_0)
    out = jax.block_until_ready(out)

    assert out.shape == (16, 16, out_channels), out.shape
    assert out.dtype == jnp.float32
    assert bool(jnp.all(jnp.isfinite(out)))

    # The reference mirrors the kernel's numerics (bf16 MXU operands, f32 accumulation,
    # f32 epilogue); omega=30 amplifies tiny rounding/sin-implementation deltas, hence
    # a loose tolerance.
    ref = finer_forward_reference(image, params,
                                  first_omega_0=first_omega_0, hidden_omega_0=hidden_omega_0)
    max_err = float(jnp.max(jnp.abs(out - ref)))
    assert max_err < 5e-2, f"max abs error vs reference: {max_err}"

    print("KERNEL_OK")
</pallas_src>

<mosaic_0001>
module attributes {stable_mosaic.version = 11 : i64} {
  func.func @_finer_mlp_kernel(%arg0: i32, %arg1: memref<2x256xf32, #tpu.memory_space<vmem>>, %arg2: memref<32x2xf32, #tpu.memory_space<vmem>>, %arg3: memref<32x1xf32, #tpu.memory_space<vmem>>, %arg4: memref<2x32x32xbf16, #tpu.memory_space<vmem>>, %arg5: memref<2x32x1xf32, #tpu.memory_space<vmem>>, %arg6: memref<3x32xbf16, #tpu.memory_space<vmem>>, %arg7: memref<3x1xf32, #tpu.memory_space<vmem>>, %arg8: memref<3x256xf32, #tpu.memory_space<vmem>>) attributes {dimension_semantics = [#tpu.dimension_semantics<parallel>], iteration_bounds = array<i64: 1>, scalar_prefetch = 0 : i64, scratch_operands = 0 : i64, tpu.core_type = #tpu.core_type<tc>, window_params = [{transform_indices = @transform_0, window_bounds = array<i64: 2, 256>}, {pipeline_mode = #tpu.pipeline_mode<synchronous>, transform_indices = @transform_1, window_bounds = array<i64: 32, 2>}, {pipeline_mode = #tpu.pipeline_mode<synchronous>, transform_indices = @transform_2, window_bounds = array<i64: 32, 1>}, {pipeline_mode = #tpu.pipeline_mode<synchronous>, transform_indices = @transform_3, window_bounds = array<i64: 2, 32, 32>}, {pipeline_mode = #tpu.pipeline_mode<synchronous>, transform_indices = @transform_4, window_bounds = array<i64: 2, 32, 1>}, {pipeline_mode = #tpu.pipeline_mode<synchronous>, transform_indices = @transform_5, window_bounds = array<i64: 3, 32>}, {pipeline_mode = #tpu.pipeline_mode<synchronous>, transform_indices = @transform_6, window_bounds = array<i64: 3, 1>}, {transform_indices = @transform_7, window_bounds = array<i64: 3, 256>}]} {
    %c0 = arith.constant 0 : index
    %c0_0 = arith.constant 0 : index
    %0 = vector.load %arg1[%c0, %c0_0] : memref<2x256xf32, #tpu.memory_space<vmem>>, vector<2x256xf32>
    %c0_1 = arith.constant 0 : index
    %c0_2 = arith.constant 0 : index
    %1 = vector.load %arg2[%c0_1, %c0_2] : memref<32x2xf32, #tpu.memory_space<vmem>>, vector<32x2xf32>
    %c0_3 = arith.constant 0 : index
    %c0_4 = arith.constant 0 : index
    %2 = vector.load %arg3[%c0_3, %c0_4] : memref<32x1xf32, #tpu.memory_space<vmem>>, vector<32x1xf32>
    %3 = vector.extract_strided_slice %1 {offsets = [0, 0], sizes = [32, 1], strides = [1, 1]} : vector<32x2xf32> to vector<32x1xf32>
    %4 = vector.extract_strided_slice %0 {offsets = [0, 0], sizes = [1, 256], strides = [1, 1]} : vector<2x256xf32> to vector<1x256xf32>
    %5 = vector.broadcast %3 : vector<32x1xf32> to vector<32x256xf32>
    %6 = vector.broadcast %4 : vector<1x256xf32> to vector<32x256xf32>
    %7 = arith.mulf %5, %6 : vector<32x256xf32>
    %8 = vector.extract_strided_slice %1 {offsets = [0, 1], sizes = [32, 1], strides = [1, 1]} : vector<32x2xf32> to vector<32x1xf32>
    %9 = vector.extract_strided_slice %0 {offsets = [1, 0], sizes = [1, 256], strides = [1, 1]} : vector<2x256xf32> to vector<1x256xf32>
    %10 = vector.broadcast %8 : vector<32x1xf32> to vector<32x256xf32>
    %11 = vector.broadcast %9 : vector<1x256xf32> to vector<32x256xf32>
    %12 = arith.mulf %10, %11 : vector<32x256xf32>
    %13 = arith.addf %7, %12 : vector<32x256xf32>
    %14 = vector.broadcast %2 : vector<32x1xf32> to vector<32x256xf32>
    %15 = arith.addf %13, %14 : vector<32x256xf32>
    %16 = math.absf %15 : vector<32x256xf32>
    %cst = arith.constant 1.000000e+00 : f32
    %17 = vector.broadcast %cst : f32 to vector<32x256xf32>
    %18 = arith.addf %16, %17 : vector<32x256xf32>
    %cst_5 = arith.constant 3.000000e+01 : f32
    %19 = vector.broadcast %cst_5 : f32 to vector<32x256xf32>
    %20 = arith.mulf %19, %18 : vector<32x256xf32>
    %21 = arith.mulf %20, %15 : vector<32x256xf32>
    %22 = math.sin %21 : vector<32x256xf32>
    %c0_6 = arith.constant 0 : index
    %c0_7 = arith.constant 0 : index
    %c0_8 = arith.constant 0 : index
    %23 = vector.load %arg4[%c0_6, %c0_7, %c0_8] : memref<2x32x32xbf16, #tpu.memory_space<vmem>>, vector<1x32x32xbf16>
    %24 = vector.shape_cast %23 : vector<1x32x32xbf16> to vector<32x32xbf16>
    %c0_9 = arith.constant 0 : index
    %c0_10 = arith.constant 0 : index
    %c0_11 = arith.constant 0 : index
    %25 = vector.load %arg5[%c0_9, %c0_10, %c0_11] : memref<2x32x1xf32, #tpu.memory_space<vmem>>, vector<1x32x1xf32>
    %26 = vector.shape_cast %25 : vector<1x32x1xf32> to vector<32x1xf32>
    %27 = arith.truncf %22 : vector<32x256xf32> to vector<32x256xbf16>
    %cst_12 = arith.constant dense<0.000000e+00> : vector<32x256xf32>
    %28 = tpu.matmul %24, %27, %cst_12 {dimension_numbers = #tpu.dot_dimension_numbers<[1], [0], [0], [1], [0, 0, 1, 1], [], []>} : vector<32x32xbf16>, vector<32x256xbf16>, vector<32x256xf32> -> vector<32x256xf32>
    %29 = vector.broadcast %26 : vector<32x1xf32> to vector<32x256xf32>
    %30 = arith.addf %28, %29 : vector<32x256xf32>
    %31 = math.absf %30 : vector<32x256xf32>
    %cst_13 = arith.constant 1.000000e+00 : f32
    %32 = vector.broadcast %cst_13 : f32 to vector<32x256xf32>
    %33 = arith.addf %31, %32 : vector<32x256xf32>
    %cst_14 = arith.constant 3.000000e+01 : f32
    %34 = vector.broadcast %cst_14 : f32 to vector<32x256xf32>
    %35 = arith.mulf %34, %33 : vector<32x256xf32>
    %36 = arith.mulf %35, %30 : vector<32x256xf32>
    %37 = math.sin %36 : vector<32x256xf32>
    %c1 = arith.constant 1 : index
    %c0_15 = arith.constant 0 : index
    %c0_16 = arith.constant 0 : index
    %38 = vector.load %arg4[%c1, %c0_15, %c0_16] : memref<2x32x32xbf16, #tpu.memory_space<vmem>>, vector<1x32x32xbf16>
    %39 = vector.shape_cast %38 : vector<1x32x32xbf16> to vector<32x32xbf16>
    %c1_17 = arith.constant 1 : index
    %c0_18 = arith.constant 0 : index
    %c0_19 = arith.constant 0 : index
    %40 = vector.load %arg5[%c1_17, %c0_18, %c0_19] : memref<2x32x1xf32, #tpu.memory_space<vmem>>, vector<1x32x1xf32>
    %41 = vector.shape_cast %40 : vector<1x32x1xf32> to vector<32x1xf32>
    %42 = arith.truncf %37 : vector<32x256xf32> to vector<32x256xbf16>
    %cst_20 = arith.constant dense<0.000000e+00> : vector<32x256xf32>
    %43 = tpu.matmul %39, %42, %cst_20 {dimension_numbers = #tpu.dot_dimension_numbers<[1], [0], [0], [1], [0, 0, 1, 1], [], []>} : vector<32x32xbf16>, vector<32x256xbf16>, vector<32x256xf32> -> vector<32x256xf32>
    %44 = vector.broadcast %41 : vector<32x1xf32> to vector<32x256xf32>
    %45 = arith.addf %43, %44 : vector<32x256xf32>
    %46 = math.absf %45 : vector<32x256xf32>
    %cst_21 = arith.constant 1.000000e+00 : f32
    %47 = vector.broadcast %cst_21 : f32 to vector<32x256xf32>
    %48 = arith.addf %46, %47 : vector<32x256xf32>
    %cst_22 = arith.constant 3.000000e+01 : f32
    %49 = vector.broadcast %cst_22 : f32 to vector<32x256xf32>
    %50 = arith.mulf %49, %48 : vector<32x256xf32>
    %51 = arith.mulf %50, %45 : vector<32x256xf32>
    %52 = math.sin %51 : vector<32x256xf32>
    %c0_23 = arith.constant 0 : index
    %c0_24 = arith.constant 0 : index
    %53 = vector.load %arg6[%c0_23, %c0_24] : memref<3x32xbf16, #tpu.memory_space<vmem>>, vector<3x32xbf16>
    %54 = arith.truncf %52 : vector<32x256xf32> to vector<32x256xbf16>
    %cst_25 = arith.constant dense<0.000000e+00> : vector<3x256xf32>
    %55 = tpu.matmul %53, %54, %cst_25 {dimension_numbers = #tpu.dot_dimension_numbers<[1], [0], [0], [1], [0, 0, 1, 1], [], []>} : vector<3x32xbf16>, vector<32x256xbf16>, vector<3x256xf32> -> vector<3x256xf32>
    %c0_26 = arith.constant 0 : index
    %c0_27 = arith.constant 0 : index
    %56 = vector.load %arg7[%c0_26, %c0_27] : memref<3x1xf32, #tpu.memory_space<vmem>>, vector<3x1xf32>
    %57 = vector.broadcast %56 : vector<3x1xf32> to vector<3x256xf32>
    %58 = arith.addf %55, %57 : vector<3x256xf32>
    %c0_28 = arith.constant 0 : index
    %c0_29 = arith.constant 0 : index
    %59 = vector.load %arg8[%c0_28, %c0_29] : memref<3x256xf32, #tpu.memory_space<vmem>>, vector<3x256xf32>
    tpu.vector_store %arg8[%c0_28, %c0_29], %58 {strides = array<i32>} : memref<3x256xf32, #tpu.memory_space<vmem>>, vector<3x256xf32>,
    return
  }
  func.func @transform_0(%arg0: i32) -> (i32, i32) {
    %c0_i32 = arith.constant 0 : i32
    %c0_i32_0 = arith.constant 0 : i32
    return %c0_i32, %arg0 : i32, i32
  }
  func.func @transform_1(%arg0: i32) -> (i32, i32) {
    %c0_i32 = arith.constant 0 : i32
    %c0_i32_0 = arith.constant 0 : i32
    %c0_i32_1 = arith.constant 0 : i32
    return %c0_i32, %c0_i32_0 : i32, i32
  }
  func.func @transform_2(%arg0: i32) -> (i32, i32) {
    %c0_i32 = arith.constant 0 : i32
    %c0_i32_0 = arith.constant 0 : i32
    %c0_i32_1 = arith.constant 0 : i32
    return %c0_i32, %c0_i32_0 : i32, i32
  }
  func.func @transform_3(%arg0: i32) -> (i32, i32, i32) {
    %c0_i32 = arith.constant 0 : i32
    %c0_i32_0 = arith.constant 0 : i32
    %c0_i32_1 = arith.constant 0 : i32
    %c0_i32_2 = arith.constant 0 : i32
    return %c0_i32, %c0_i32_0, %c0_i32_1 : i32, i32, i32
  }
  func.func @transform_4(%arg0: i32) -> (i32, i32, i32) {
    %c0_i32 = arith.constant 0 : i32
    %c0_i32_0 = arith.constant 0 : i32
    %c0_i32_1 = arith.constant 0 : i32
    %c0_i32_2 = arith.constant 0 : i32
    return %c0_i32, %c0_i32_0, %c0_i32_1 : i32, i32, i32
  }
  func.func @transform_5(%arg0: i32) -> (i32, i32) {
    %c0_i32 = arith.constant 0 : i32
    %c0_i32_0 = arith.constant 0 : i32
    %c0_i32_1 = arith.constant 0 : i32
    return %c0_i32, %c0_i32_0 : i32, i32
  }
  func.func @transform_6(%arg0: i32) -> (i32, i32) {
    %c0_i32 = arith.constant 0 : i32
    %c0_i32_0 = arith.constant 0 : i32
    %c0_i32_1 = arith.constant 0 : i32
    return %c0_i32, %c0_i32_0 : i32, i32
  }
  func.func @transform_7(%arg0: i32) -> (i32, i32) {
    %c0_i32 = arith.constant 0 : i32
    %c0_i32_0 = arith.constant 0 : i32
    return %c0_i32, %arg0 : i32, i32
  }
}

</mosaic_0001>

<llo_original>
// kernel: tpu_custom_call.1
$region0: #{tpu_custom_call.1}
  #allocation0 [shape = 'u32[]', space=smem, size = 0x4, offset = 0x4, fixed_abs, tag = 'smem constant byte address 0x4 - core index']
  #allocation1 [shape = 'u32[144,128]{1,0:T(1,128)}', space=vmem, size = 0x12000, scoped, tag = 'internal scratch']
  %s0 = inlined_call_operand.vmem [shape: f32[2,256], index: 0, kind: input, shape index: {}]
  %s1 = inlined_call_operand.vmem [shape: f32[32,2], index: 1, kind: input, shape index: {}]
  %s2 = inlined_call_operand.vmem [shape: f32[32,1], index: 2, kind: input, shape index: {}]
  %s3 = inlined_call_operand.vmem [shape: bf16[2,32,32], index: 3, kind: input, shape index: {}]
  %s4 = inlined_call_operand.vmem [shape: f32[2,32,1], index: 4, kind: input, shape index: {}]
  %s5 = inlined_call_operand.vmem [shape: bf16[3,32], index: 5, kind: input, shape index: {}]
  %s6 = inlined_call_operand.vmem [shape: f32[3,1], index: 6, kind: input, shape index: {}]
  %s7 = inlined_call_operand.hbm [shape: f32[3,256], index: 7, kind: output, shape index: {}]
  %s8 = sld [smem:[#allocation0]]
  $region38: #{tpu_custom_call.1} parent=0
    _
  %s10 = ssub.s32 1, %s8
  %s11 = scalar_select 0, %s10, %s8
  $region1: #{tpu_custom_call.1} parent=0
    #allocation2 [shape = 'u8[4096]{0}', space=vmem, size = 0x1000, scoped, tag = 'output window, operand 0, single buffered']
    #allocation3 [shape = 's32[1]{0}', space=sflag, size = 0x4, scoped, tag = 'scoped memory for tpu_custom_call.1']
    %12 = vsyncpa [#allocation3], 0
    // Predicated region
    $region2: #{tpu_custom_call.1} parent=1 // pred_check
      _
    $region3: #{tpu_custom_call.1} parent=1 // pred_check_branch
      %14 = sbr.rel (0) target = $region5
    $region4: #{tpu_custom_call.1} parent=1 // pred_region
      _
    $region5: #{tpu_custom_call.1} parent=1 // pred_fallthru
      _
    // Predicated region
    $region6: #{tpu_custom_call.1} parent=1 // pred_check
      _
    $region7: #{tpu_custom_call.1} parent=1 // pred_check_branch
      %16 = sbr.rel (0) target = $region9
    $region8: #{tpu_custom_call.1} parent=1 // pred_region
      _
    $region9: #{tpu_custom_call.1} parent=1 // pred_fallthru
      _
    // Predicated region
    $region10: #{tpu_custom_call.1} parent=1 // pred_check
      _
    $region11: #{tpu_custom_call.1} parent=1 // pred_check_branch
      %18 = sbr.rel (0) target = $region13
    $region12: #{tpu_custom_call.1} parent=1 // pred_region
      _
    $region13: #{tpu_custom_call.1} parent=1 // pred_fallthru
      _
    // Predicated region
    $region14: #{tpu_custom_call.1} parent=1 // pred_check
      _
    $region15: #{tpu_custom_call.1} parent=1 // pred_check_branch
      %20 = sbr.rel (0) target = $region17
    $region16: #{tpu_custom_call.1} parent=1 // pred_region
      _
    $region17: #{tpu_custom_call.1} parent=1 // pred_fallthru
      _
    // Predicated region
    $region18: #{tpu_custom_call.1} parent=1 // pred_check
      _
    $region19: #{tpu_custom_call.1} parent=1 // pred_check_branch
      %22 = sbr.rel (0) target = $region21
    $region20: #{tpu_custom_call.1} parent=1 // pred_region
      _
    $region21: #{tpu_custom_call.1} parent=1 // pred_fallthru
      _
    // Predicated region
    $region22: #{tpu_custom_call.1} parent=1 // pred_check
      _
    $region23: #{tpu_custom_call.1} parent=1 // pred_check_branch
      %24 = sbr.rel (0) target = $region25
    $region24: #{tpu_custom_call.1} parent=1 // pred_region
      _
    $region25: #{tpu_custom_call.1} parent=1 // pred_fallthru
      _
    // Predicated region
    $region26: #{tpu_custom_call.1} parent=1 // pred_check
      _
    $region27: #{tpu_custom_call.1} parent=1 // pred_check_branch
      %26 = sbr.rel (0) target = $region29
    $region28: #{tpu_custom_call.1} parent=1 // pred_region
      _
    $region29: #{tpu_custom_call.1} parent=1 // pred_fallthru
      _
    %v28 = vld [vmem:[%s0] sm:$0xf]
    %v29 = vld [vmem:[%s1] sm:$0xff]
    %v30 = vld [vmem:[%s1 + $0x8] sm:$0xff]
    %v31 = vld [vmem:[%s1 + $0x10] sm:$0xff]
    %v32 = vld [vmem:[%s1 + $0x18] sm:$0xff]
    %v33 = vld [vmem:[%s2] sm:$0xff]
    %v34 = vld [vmem:[%s2 + $0x8] sm:$0xff]
    %v35 = vld [vmem:[%s2 + $0x10] sm:$0xff]
    %v36 = vld [vmem:[%s2 + $0x18] sm:$0xff]
    %38 = vset.pattern.permute.xlu0 0
    %39 = vperm.xlu0 %38, %v29
    %v40 = vpop.permute.xlu0 %39
    %43 = vset.pattern.permute.xlu0 0
    %44 = vperm.xlu0 %43, %v30
    %v45 = vpop.permute.xlu0 %44
    %48 = vset.pattern.permute.xlu0 0
    %49 = vperm.xlu0 %48, %v31
    %v50 = vpop.permute.xlu0 %49
    %53 = vset.pattern.permute.xlu0 0
    %54 = vperm.xlu0 %53, %v32
    %v55 = vpop.permute.xlu0 %54
    %v58 = vlaneseq
    %v59 = vshrl.u32 %v58, 7
    %v60 = vsub.s32 0, %v59
    %v61 = vrot.slane %v28, %v60
    %v62 = vlaneseq
    %v63 = vshrl.u32 %v62, 7
    %v64 = vsub.s32 2, %v63
    %v65 = vrot.slane %v28, %v64
    %v68 = vlaneseq
    %v69 = vshrl.u32 %v68, 7
    %v70 = vsub.s32 0, %v69
    %v71 = vrot.slane %v61, %v70
    %v72 = vlaneseq
    %v73 = vshrl.u32 %v72, 7
    %v74 = vsub.s32 0, %v73
    %v75 = vrot.slane %v65, %v74
    %v76 = vmul.f32 %v40, %v71
    %v77 = vmul.f32 %v40, %v75
    %v78 = vmul.f32 %v45, %v71
    %v79 = vmul.f32 %v45, %v75
    %v80 = vmul.f32 %v50, %v71
    %v81 = vmul.f32 %v50, %v75
    %v82 = vmul.f32 %v55, %v71
    %v83 = vmul.f32 %v55, %v75
    %84 = vset.pattern.permute.xlu0 1
    %85 = vperm.xlu0 %84, %v29
    %v86 = vpop.permute.xlu0 %85
    %88 = vset.pattern.permute.xlu0 1
    %89 = vperm.xlu0 %88, %v30
    %v90 = vpop.permute.xlu0 %89
    %92 = vset.pattern.permute.xlu0 1
    %93 = vperm.xlu0 %92, %v31
    %v94 = vpop.permute.xlu0 %93
    %96 = vset.pattern.permute.xlu0 1
    %97 = vperm.xlu0 %96, %v32
    %v98 = vpop.permute.xlu0 %97
    %v100 = vlaneseq
    %v101 = vshrl.u32 %v100, 7
    %v102 = vsub.s32 1, %v101
    %v103 = vrot.slane %v28, %v102
    %v104 = vlaneseq
    %v105 = vshrl.u32 %v104, 7
    %v106 = vsub.s32 3, %v105
    %v107 = vrot.slane %v28, %v106
    %v110 = vlaneseq
    %v111 = vshrl.u32 %v110, 7
    %v112 = vsub.s32 1, %v111
    %v113 = vrot.slane %v103, %v112
    %v114 = vlaneseq
    %v115 = vshrl.u32 %v114, 7
    %v116 = vsub.s32 1, %v115
    %v117 = vrot.slane %v107, %v116
    %v118 = vmul.f32 %v86, %v113
    %v119 = vmul.f32 %v86, %v117
    %v120 = vmul.f32 %v90, %v113
    %v121 = vmul.f32 %v90, %v117
    %v122 = vmul.f32 %v94, %v113
    %v123 = vmul.f32 %v94, %v117
    %v124 = vmul.f32 %v98, %v113
    %v125 = vmul.f32 %v98, %v117
    %v126 = vadd.f32 %v76, %v118
    %v127 = vadd.f32 %v77, %v119
    %v128 = vadd.f32 %v78, %v120
    %v129 = vadd.f32 %v79, %v121
    %v130 = vadd.f32 %v80, %v122
    %v131 = vadd.f32 %v81, %v123
    %v132 = vadd.f32 %v82, %v124
    %v133 = vadd.f32 %v83, %v125
    %135 = vset.pattern.permute.xlu0 0
    %136 = vperm.xlu0 %135, %v33
    %v137 = vpop.permute.xlu0 %136
    %140 = vset.pattern.permute.xlu0 0
    %141 = vperm.xlu0 %140, %v34
    %v142 = vpop.permute.xlu0 %141
    %145 = vset.pattern.permute.xlu0 0
    %146 = vperm.xlu0 %145, %v35
    %v147 = vpop.permute.xlu0 %146
    %150 = vset.pattern.permute.xlu0 0
    %151 = vperm.xlu0 %150, %v36
    %v152 = vpop.permute.xlu0 %151
    %v154 = vadd.f32 %v126, %v137
    %v155 = vadd.f32 %v127, %v137
    %v156 = vadd.f32 %v128, %v142
    %v157 = vadd.f32 %v129, %v142
    %v158 = vadd.f32 %v130, %v147
    %v159 = vadd.f32 %v131, %v147
    %v160 = vadd.f32 %v132, %v152
    %v161 = vadd.f32 %v133, %v152
    %v162 = vand.u32 2147483647, %v154
    %v163 = vand.u32 2147483647, %v155
    %v164 = vand.u32 2147483647, %v156
    %v165 = vand.u32 2147483647, %v157
    %v166 = vand.u32 2147483647, %v158
    %v167 = vand.u32 2147483647, %v159
    %v168 = vand.u32 2147483647, %v160
    %v169 = vand.u32 2147483647, %v161
    %v170 = vadd.f32 %v162, 1.0
    %v171 = vadd.f32 %v163, 1.0
    %v172 = vadd.f32 %v164, 1.0
    %v173 = vadd.f32 %v165, 1.0
    %v174 = vadd.f32 %v166, 1.0
    %v175 = vadd.f32 %v167, 1.0
    %v176 = vadd.f32 %v168, 1.0
    %v177 = vadd.f32 %v169, 1.0
    %v178 = vmul.f32 %v170, 30.0
    %v179 = vmul.f32 %v171, 30.0
    %v180 = vmul.f32 %v172, 30.0
    %v181 = vmul.f32 %v173, 30.0
    %v182 = vmul.f32 %v174, 30.0
    %v183 = vmul.f32 %v175, 30.0
    %v184 = vmul.f32 %v176, 30.0
    %v185 = vmul.f32 %v177, 30.0
    %v186 = vmul.f32 %v178, %v154
    %v187 = vmul.f32 %v179, %v155
    %v188 = vmul.f32 %v180, %v156
    %v189 = vmul.f32 %v181, %v157
    %v190 = vmul.f32 %v182, %v158
    %v191 = vmul.f32 %v183, %v159
    %v192 = vmul.f32 %v184, %v160
    %v193 = vmul.f32 %v185, %v161
    %v194 = vand.u32 2147483647, %v186
    %vm195 = vcmp.le.f32.partialorder %v194, 0.7853982
    %vm196 = vcmp.lt.s32.totalorder %v186, 0
    %v197 = vand.u32 %v186, 2139095040
    %v198 = vshrl.u32 %v197, 23
    %v199 = vsub.s32 %v198, 127
    %v200 = vand.u32 2147483647, %v186
    %v201 = vand.u32 %v200, 8388607
    %v202 = vor.u32 %v201, 8388608
    %v203 = vsub.s32 0, %v202
    %v204 = vadd.s32 %v199, 1
    %vm205 = vcmp.gt.s32.totalorder %v204, 0
    %v206 = vsel %vm205, %v204, 0
    %v207 = vshrl.u32 %v206, 5
    %v208 = vand.u32 %v206, 31
    %v209 = vsub.s32 32, %v208
    %v210 = vshrl.u32 683565275, %v209
    %v211 = vshll.u32 683565275, %v208
    %v212 = vshrl.u32 2475754826, %v209
    %v213 = vor.u32 %v211, %v212
    %v214 = vshll.u32 2475754826, %v208
    %v215 = vshrl.u32 2131351028, %v209
    %v216 = vor.u32 %v214, %v215
    %v217 = vshll.u32 2131351028, %v208
    %v218 = vshrl.u32 2102212464, %v209
    %v219 = vor.u32 %v217, %v218
    %v220 = vshll.u32 2102212464, %v208
    %v221 = vshrl.u32 920167782, %v209
    %v222 = vor.u32 %v220, %v221
    %v223 = vshll.u32 920167782, %v208
    %v224 = vshrl.u32 1326507024, %v209
    %v225 = vor.u32 %v223, %v224
    %vm226 = vcmp.lt.s32.totalorder %v207, 1
    %vm227 = vcmp.lt.s32.totalorder %v207, 2
    %vm228 = vcmp.lt.s32.totalorder %v207, 3
    %vm229 = vcmp.lt.s32.totalorder %v207, 4
    %v230 = vsel %vm226, %v210, %v213
    %v231 = vsel %vm229, %v219, 2102212464
    %v232 = vsel %vm228, %v216, %v231
    %v233 = vsel %vm227, %v230, %v232
    %v234 = vsel %vm226, %v213, %v216
    %v235 = vsel %vm229, %v222, 920167782
    %v236 = vsel %vm228, %v219, %v235
    %v237 = vsel %vm227, %v234, %v236
    %v238 = vsel %vm226, %v216, %v219
    %v239 = vsel %vm229, %v225, 1326507024
    %v240 = vsel %vm228, %v222, %v239
    %v241 = vsel %vm227, %v238, %v240
    %v242 = vshll.u32 %v202, 8
    %v243 = vmul.u32.u64.compose %v242, %v241
    %v244 = vextract.low.u32 %v243
    %v245 = vextract.high.u32 %v243
    %v246 = vmul.u32.u64.compose %v242, %v237
    %v247 = vextract.low.u32 %v246
    %v248 = vextract.high.u32 %v246
    %v249 = vmul.u32 %v242, %v233
    %v250 = vadd.s32 %v245, %v247
    %vm251 = vc.u32 %v245, %v247
    %v252 = vadd.s32 %v248, 1
    %v253 = vsel %vm251, %v252, %v248
    %v254 = vadd.s32 %v249, %v253
    %v255 = vadd.s32 %v254, 536870912
    %v256 = vshrl.u32 %v255, 30
    %v257 = vshll.u32 %v256, 30
    %v258 = vsub.s32 %v254, %v257
    %vm259 = vcmp.lt.s32.totalorder %v258, 0
    %v260 = vsub.s32 0, %v258
    %v261 = vsel %vm259, %v260, %v258
    %v262 = vclz %v261
    %v263 = vsub.s32 %v262, 2
    %vm264 = vcmp.gt.s32.totalorder 0, %v263
    %v265 = vsel %vm264, 0, %v263
    %v266 = vsub.s32 32, %v265
    %v267 = vshll.u32 %v258, %v265
    %v268 = vshrl.u32 %v250, %v266
    %v269 = vor.u32 %v267, %v268
    %v270 = vsub.s32 4294967266, %v265
    %v271 = vadd.s32 %v270, 127
    %v272 = vshll.u32 %v271, 23
    %v273 = vor.u32 4788187, %v272
    %v274 = vand.u32 2147483647, %v273
    %v276 = vcvt.s32.f32 %v269
    %v277 = vmul.f32 %v276, %v274
    %v278 = vxor.u32 %v277, 2147483648
    %v279 = vsel %vm196, %v278, %v277
    %v280 = vsub.s32 4, %v256
    %v281 = vsel %vm196, %v280, %v256
    %v282 = vsel %vm195, %v186, %v279
    %v283 = vsel %vm195, 0, %v281
    %v284 = vcosq.f32.pop %v282
    %v285 = vsinq.f32.pop %v282
    %vm286 = vweird.f32 %v186
    %v287 = vadd.s32 %v283, 3
    %v288 = vand.u32 %v287, 3
    %vm289 = vcmp.lt.s32.totalorder %v288, 2
    %vm290 = vcmp.eq.s32.totalorder %v288, 0
    %v291 = vxor.u32 %v285, 2147483648
    %v292 = vsel %vm290, %v284, %v291
    %vm293 = vcmp.eq.s32.totalorder %v288, 2
    %v294 = vxor.u32 %v284, 2147483648
    %v295 = vsel %vm293, %v294, %v285
    %v296 = vsel %vm289, %v292, %v295
    %v297 = vsel %vm286, nan, %v296
    %v298 = vand.u32 2147483647, %v187
    %vm299 = vcmp.le.f32.partialorder %v298, 0.7853982
    %vm300 = vcmp.lt.s32.totalorder %v187, 0
    %v301 = vand.u32 %v187, 2139095040
    %v302 = vshrl.u32 %v301, 23
    %v303 = vsub.s32 %v302, 127
    %v304 = vand.u32 2147483647, %v187
    %v305 = vand.u32 %v304, 8388607
    %v306 = vor.u32 %v305, 8388608
    %v307 = vsub.s32 0, %v306
    %v308 = vadd.s32 %v303, 1
    %vm309 = vcmp.gt.s32.totalorder %v308, 0
    %v310 = vsel %vm309, %v308, 0
    %v311 = vshrl.u32 %v310, 5
    %v312 = vand.u32 %v310, 31
    %v313 = vsub.s32 32, %v312
    %v314 = vshrl.u32 683565275, %v313
    %v315 = vshll.u32 683565275, %v312
    %v316 = vshrl.u32 2475754826, %v313
    %v317 = vor.u32 %v315, %v316
    %v318 = vshll.u32 2475754826, %v312
    %v319 = vshrl.u32 2131351028, %v313
    %v320 = vor.u32 %v318, %v319
    %v321 = vshll.u32 2131351028, %v312
    %v322 = vshrl.u32 2102212464, %v313
    %v323 = vor.u32 %v321, %v322
    %v324 = vshll.u32 2102212464, %v312
    %v325 = vshrl.u32 920167782, %v313
    %v326 = vor.u32 %v324, %v325
    %v327 = vshll.u32 920167782, %v312
    %v328 = vshrl.u32 1326507024, %v313
    %v329 = vor.u32 %v327, %v328
    %vm330 = vcmp.lt.s32.totalorder %v311, 1
    %vm331 = vcmp.lt.s32.totalorder %v311, 2
    %vm332 = vcmp.lt.s32.totalorder %v311, 3
    %vm333 = vcmp.lt.s32.totalorder %v311, 4
    %v334 = vsel %vm330, %v314, %v317
    %v335 = vsel %vm333, %v323, 2102212464
    %v336 = vsel %vm332, %v320, %v335
    %v337 = vsel %vm331, %v334, %v336
    %v338 = vsel %vm330, %v317, %v320
    %v339 = vsel %vm333, %v326, 920167782
    %v340 = vsel %vm332, %v323, %v339
    %v341 = vsel %vm331, %v338, %v340
    %v342 = vsel %vm330, %v320, %v323
    %v343 = vsel %vm333, %v329, 1326507024
    %v344 = vsel %vm332, %v326, %v343
    %v345 = vsel %vm331, %v342, %v344
    %v346 = vshll.u32 %v306, 8
    %v347 = vmul.u32.u64.compose %v346, %v345
    %v348 = vextract.low.u32 %v347
    %v349 = vextract.high.u32 %v347
    %v350 = vmul.u32.u64.compose %v346, %v341
    %v351 = vextract.low.u32 %v350
    %v352 = vextract.high.u32 %v350
    %v353 = vmul.u32 %v346, %v337
    %v354 = vadd.s32 %v349, %v351
    %vm355 = vc.u32 %v349, %v351
    %v356 = vadd.s32 %v352, 1
    %v357 = vsel %vm355, %v356, %v352
    %v358 = vadd.s32 %v353, %v357
    %v359 = vadd.s32 %v358, 536870912
    %v360 = vshrl.u32 %v359, 30
    %v361 = vshll.u32 %v360, 30
    %v362 = vsub.s32 %v358, %v361
    %vm363 = vcmp.lt.s32.totalorder %v362, 0
    %v364 = vsub.s32 0, %v362
    %v365 = vsel %vm363, %v364, %v362
    %v366 = vclz %v365
    %v367 = vsub.s32 %v366, 2
    %vm368 = vcmp.gt.s32.totalorder 0, %v367
    %v369 = vsel %vm368, 0, %v367
    %v370 = vsub.s32 32, %v369
    %v371 = vshll.u32 %v362, %v369
    %v372 = vshrl.u32 %v354, %v370
    %v373 = vor.u32 %v371, %v372
    %v374 = vsub.s32 4294967266, %v369
    %v375 = vadd.s32 %v374, 127
    %v376 = vshll.u32 %v375, 23
    %v377 = vor.u32 4788187, %v376
    %v378 = vand.u32 2147483647, %v377
    %v380 = vcvt.s32.f32 %v373
    %v381 = vmul.f32 %v380, %v378
    %v382 = vxor.u32 %v381, 2147483648
    %v383 = vsel %vm300, %v382, %v381
    %v384 = vsub.s32 4, %v360
    %v385 = vsel %vm300, %v384, %v360
    %v386 = vsel %vm299, %v187, %v383
    %v387 = vsel %vm299, 0, %v385
    %v388 = vcosq.f32.pop %v386
    %v389 = vsinq.f32.pop %v386
    %vm390 = vweird.f32 %v187
    %v391 = vadd.s32 %v387, 3
    %v392 = vand.u32 %v391, 3
    %vm393 = vcmp.lt.s32.totalorder %v392, 2
    %vm394 = vcmp.eq.s32.totalorder %v392, 0
    %v395 = vxor.u32 %v389, 2147483648
    %v396 = vsel %vm394, %v388, %v395
    %vm397 = vcmp.eq.s32.totalorder %v392, 2
    %v398 = vxor.u32 %v388, 2147483648
    %v399 = vsel %vm397, %v398, %v389
    %v400 = vsel %vm393, %v396, %v399
    %v401 = vsel %vm390, nan, %v400
    %v402 = vand.u32 2147483647, %v188
    %vm403 = vcmp.le.f32.partialorder %v402, 0.7853982
    %vm404 = vcmp.lt.s32.totalorder %v188, 0
    %v405 = vand.u32 %v188, 2139095040
    %v406 = vshrl.u32 %v405, 23
    %v407 = vsub.s32 %v406, 127
    %v408 = vand.u32 2147483647, %v188
    %v409 = vand.u32 %v408, 8388607
    %v410 = vor.u32 %v409, 8388608
    %v411 = vsub.s32 0, %v410
    %v412 = vadd.s32 %v407, 1
    %vm413 = vcmp.gt.s32.totalorder %v412, 0
    %v414 = vsel %vm413, %v412, 0
    %v415 = vshrl.u32 %v414, 5
    %v416 = vand.u32 %v414, 31
    %v417 = vsub.s32 32, %v416
    %v418 = vshrl.u32 683565275, %v417
    %v419 = vshll.u32 683565275, %v416
    %v420 = vshrl.u32 2475754826, %v417
    %v421 = vor.u32 %v419, %v420
    %v422 = vshll.u32 2475754826, %v416
    %v423 = vshrl.u32 2131351028, %v417
    %v424 = vor.u32 %v422, %v423
    %v425 = vshll.u32 2131351028, %v416
    %v426 = vshrl.u32 2102212464, %v417
    %v427 = vor.u32 %v425, %v426
    %v428 = vshll.u32 2102212464, %v416
    %v429 = vshrl.u32 920167782, %v417
    %v430 = vor.u32 %v428, %v429
    %v431 = vshll.u32 920167782, %v416
    %v432 = vshrl.u32 1326507024, %v417
    %v433 = vor.u32 %v431, %v432
    %vm434 = vcmp.lt.s32.totalorder %v415, 1
    %vm435 = vcmp.lt.s32.totalorder %v415, 2
    %vm436 = vcmp.lt.s32.totalorder %v415, 3
    %vm437 = vcmp.lt.s32.totalorder %v415, 4
    %v438 = vsel %vm434, %v418, %v421
    %v439 = vsel %vm437, %v427, 2102212464
    %v440 = vsel %vm436, %v424, %v439
    %v441 = vsel %vm435, %v438, %v440
    %v442 = vsel %vm434, %v421, %v424
    %v443 = vsel %vm437, %v430, 920167782
    %v444 = vsel %vm436, %v427, %v443
    %v445 = vsel %vm435, %v442, %v444
    %v446 = vsel %vm434, %v424, %v427
    %v447 = vsel %vm437, %v433, 1326507024
    %v448 = vsel %vm436, %v430, %v447
    %v449 = vsel %vm435, %v446, %v448
    %v450 = vshll.u32 %v410, 8
    %v451 = vmul.u32.u64.compose %v450, %v449
    %v452 = vextract.low.u32 %v451
    %v453 = vextract.high.u32 %v451
    %v454 = vmul.u32.u64.compose %v450, %v445
    %v455 = vextract.low.u32 %v454
    %v456 = vextract.high.u32 %v454
    %v457 = vmul.u32 %v450, %v441
    %v458 = vadd.s32 %v453, %v455
    %vm459 = vc.u32 %v453, %v455
    %v460 = vadd.s32 %v456, 1
    %v461 = vsel %vm459, %v460, %v456
    %v462 = vadd.s32 %v457, %v461
    %v463 = vadd.s32 %v462, 536870912
    %v464 = vshrl.u32 %v463, 30
    %v465 = vshll.u32 %v464, 30
    %v466 = vsub.s32 %v462, %v465
    %vm467 = vcmp.lt.s32.totalorder %v466, 0
    %v468 = vsub.s32 0, %v466
    %v469 = vsel %vm467, %v468, %v466
    %v470 = vclz %v469
    %v471 = vsub.s32 %v470, 2
    %vm472 = vcmp.gt.s32.totalorder 0, %v471
    %v473 = vsel %vm472, 0, %v471
    %v474 = vsub.s32 32, %v473
    %v475 = vshll.u32 %v466, %v473
    %v476 = vshrl.u32 %v458, %v474
    %v477 = vor.u32 %v475, %v476
    %v478 = vsub.s32 4294967266, %v473
    %v479 = vadd.s32 %v478, 127
    %v480 = vshll.u32 %v479, 23
    %v481 = vor.u32 4788187, %v480
    %v482 = vand.u32 2147483647, %v481
    %v484 = vcvt.s32.f32 %v477
    %v485 = vmul.f32 %v484, %v482
    %v486 = vxor.u32 %v485, 2147483648
    %v487 = vsel %vm404, %v486, %v485
    %v488 = vsub.s32 4, %v464
    %v489 = vsel %vm404, %v488, %v464
    %v490 = vsel %vm403, %v188, %v487
    %v491 = vsel %vm403, 0, %v489
    %v492 = vcosq.f32.pop %v490
    %v493 = vsinq.f32.pop %v490
    %vm494 = vweird.f32 %v188
    %v495 = vadd.s32 %v491, 3
    %v496 = vand.u32 %v495, 3
    %vm497 = vcmp.lt.s32.totalorder %v496, 2
    %vm498 = vcmp.eq.s32.totalorder %v496, 0
    %v499 = vxor.u32 %v493, 2147483648
    %v500 = vsel %vm498, %v492, %v499
    %vm501 = vcmp.eq.s32.totalorder %v496, 2
    %v502 = vxor.u32 %v492, 2147483648
    %v503 = vsel %vm501, %v502, %v493
    %v504 = vsel %vm497, %v500, %v503
    %v505 = vsel %vm494, nan, %v504
    %v506 = vand.u32 2147483647, %v189
    %vm507 = vcmp.le.f32.partialorder %v506, 0.7853982
    %vm508 = vcmp.lt.s32.totalorder %v189, 0
    %v509 = vand.u32 %v189, 2139095040
    %v510 = vshrl.u32 %v509, 23
    %v511 = vsub.s32 %v510, 127
    %v512 = vand.u32 2147483647, %v189
    %v513 = vand.u32 %v512, 8388607
    %v514 = vor.u32 %v513, 8388608
    %v515 = vsub.s32 0, %v514
    %v516 = vadd.s32 %v511, 1
    %vm517 = vcmp.gt.s32.totalorder %v516, 0
    %v518 = vsel %vm517, %v516, 0
    %v519 = vshrl.u32 %v518, 5
    %v520 = vand.u32 %v518, 31
    %v521 = vsub.s32 32, %v520
    %v522 = vshrl.u32 683565275, %v521
    %v523 = vshll.u32 683565275, %v520
    %v524 = vshrl.u32 2475754826, %v521
    %v525 = vor.u32 %v523, %v524
    %v526 = vshll.u32 2475754826, %v520
    %v527 = vshrl.u32 2131351028, %v521
    %v528 = vor.u32 %v526, %v527
    %v529 = vshll.u32 2131351028, %v520
    %v530 = vshrl.u32 2102212464, %v521
    %v531 = vor.u32 %v529, %v530
    %v532 = vshll.u32 2102212464, %v520
    %v533 = vshrl.u32 920167782, %v521
    %v534 = vor.u32 %v532, %v533
    %v535 = vshll.u32 920167782, %v520
    %v536 = vshrl.u32 1326507024, %v521
    %v537 = vor.u32 %v535, %v536
    %vm538 = vcmp.lt.s32.totalorder %v519, 1
    %vm539 = vcmp.lt.s32.totalorder %v519, 2
    %vm540 = vcmp.lt.s32.totalorder %v519, 3
    %vm541 = vcmp.lt.s32.totalorder %v519, 4
    %v542 = vsel %vm538, %v522, %v525
    %v543 = vsel %vm541, %v531, 2102212464
    %v544 = vsel %vm540, %v528, %v543
    %v545 = vsel %vm539, %v542, %v544
    %v546 = vsel %vm538, %v525, %v528
    %v547 = vsel %vm541, %v534, 920167782
    %v548 = vsel %vm540, %v531, %v547
    %v549 = vsel %vm539, %v546, %v548
    %v550 = vsel %vm538, %v528, %v531
    %v551 = vsel %vm541, %v537, 1326507024
    %v552 = vsel %vm540, %v534, %v551
    %v553 = vsel %vm539, %v550, %v552
    %v554 = vshll.u32 %v514, 8
    %v555 = vmul.u32.u64.compose %v554, %v553
    %v556 = vextract.low.u32 %v555
    %v557 = vextract.high.u32 %v555
    %v558 = vmul.u32.u64.compose %v554, %v549
    %v559 = vextract.low.u32 %v558
    %v560 = vextract.high.u32 %v558
    %v561 = vmul.u32 %v554, %v545
    %v562 = vadd.s32 %v557, %v559
    %vm563 = vc.u32 %v557, %v559
    %v564 = vadd.s32 %v560, 1
    %v565 = vsel %vm563, %v564, %v560
    %v566 = vadd.s32 %v561, %v565
    %v567 = vadd.s32 %v566, 536870912
    %v568 = vshrl.u32 %v567, 30
    %v569 = vshll.u32 %v568, 30
    %v570 = vsub.s32 %v566, %v569
    %vm571 = vcmp.lt.s32.totalorder %v570, 0
    %v572 = vsub.s32 0, %v570
    %v573 = vsel %vm571, %v572, %v570
    %v574 = vclz %v573
    %v575 = vsub.s32 %v574, 2
    %vm576 = vcmp.gt.s32.totalorder 0, %v575
    %v577 = vsel %vm576, 0, %v575
    %v578 = vsub.s32 32, %v577
    %v579 = vshll.u32 %v570, %v577
    %v580 = vshrl.u32 %v562, %v578
    %v581 = vor.u32 %v579, %v580
    %v582 = vsub.s32 4294967266, %v577
    %v583 = vadd.s32 %v582, 127
    %v584 = vshll.u32 %v583, 23
    %v585 = vor.u32 4788187, %v584
    %v586 = vand.u32 2147483647, %v585
    %v588 = vcvt.s32.f32 %v581
    %v589 = vmul.f32 %v588, %v586
    %v590 = vxor.u32 %v589, 2147483648
    %v591 = vsel %vm508, %v590, %v589
    %v592 = vsub.s32 4, %v568
    %v593 = vsel %vm508, %v592, %v568
    %v594 = vsel %vm507, %v189, %v591
    %v595 = vsel %vm507, 0, %v593
    %v596 = vcosq.f32.pop %v594
    %v597 = vsinq.f32.pop %v594
    %vm598 = vweird.f32 %v189
    %v599 = vadd.s32 %v595, 3
    %v600 = vand.u32 %v599, 3
    %vm601 = vcmp.lt.s32.totalorder %v600, 2
    %vm602 = vcmp.eq.s32.totalorder %v600, 0
    %v603 = vxor.u32 %v597, 2147483648
    %v604 = vsel %vm602, %v596, %v603
    %vm605 = vcmp.eq.s32.totalorder %v600, 2
    %v606 = vxor.u32 %v596, 2147483648
    %v607 = vsel %vm605, %v606, %v597
    %v608 = vsel %vm601, %v604, %v607
    %v609 = vsel %vm598, nan, %v608
    %v610 = vand.u32 2147483647, %v190
    %vm611 = vcmp.le.f32.partialorder %v610, 0.7853982
    %vm612 = vcmp.lt.s32.totalorder %v190, 0
    %v613 = vand.u32 %v190, 2139095040
    %v614 = vshrl.u32 %v613, 23
    %v615 = vsub.s32 %v614, 127
    %v616 = vand.u32 2147483647, %v190
    %v617 = vand.u32 %v616, 8388607
    %v618 = vor.u32 %v617, 8388608
    %v619 = vsub.s32 0, %v618
    %v620 = vadd.s32 %v615, 1
    %vm621 = vcmp.gt.s32.totalorder %v620, 0
    %v622 = vsel %vm621, %v620, 0
    %v623 = vshrl.u32 %v622, 5
    %v624 = vand.u32 %v622, 31
    %v625 = vsub.s32 32, %v624
    %v626 = vshrl.u32 683565275, %v625
    %v627 = vshll.u32 683565275, %v624
    %v628 = vshrl.u32 2475754826, %v625
    %v629 = vor.u32 %v627, %v628
    %v630 = vshll.u32 2475754826, %v624
    %v631 = vshrl.u32 2131351028, %v625
    %v632 = vor.u32 %v630, %v631
    %v633 = vshll.u32 2131351028, %v624
    %v634 = vshrl.u32 2102212464, %v625
    %v635 = vor.u32 %v633, %v634
    %v636 = vshll.u32 2102212464, %v624
    %v637 = vshrl.u32 920167782, %v625
    %v638 = vor.u32 %v636, %v637
    %v639 = vshll.u32 920167782, %v624
    %v640 = vshrl.u32 1326507024, %v625
    %v641 = vor.u32 %v639, %v640
    %vm642 = vcmp.lt.s32.totalorder %v623, 1
    %vm643 = vcmp.lt.s32.totalorder %v623, 2
    %vm644 = vcmp.lt.s32.totalorder %v623, 3
    %vm645 = vcmp.lt.s32.totalorder %v623, 4
    %v646 = vsel %vm642, %v626, %v629
    %v647 = vsel %vm645, %v635, 2102212464
    %v648 = vsel %vm644, %v632, %v647
    %v649 = vsel %vm643, %v646, %v648
    %v650 = vsel %vm642, %v629, %v632
    %v651 = vsel %vm645, %v638, 920167782
    %v652 = vsel %vm644, %v635, %v651
    %v653 = vsel %vm643, %v650, %v652
    %v654 = vsel %vm642, %v632, %v635
    %v655 = vsel %vm645, %v641, 1326507024
    %v656 = vsel %vm644, %v638, %v655
    %v657 = vsel %vm643, %v654, %v656
    %v658 = vshll.u32 %v618, 8
    %v659 = vmul.u32.u64.compose %v658, %v657
    %v660 = vextract.low.u32 %v659
    %v661 = vextract.high.u32 %v659
    %v662 = vmul.u32.u64.compose %v658, %v653
    %v663 = vextract.low.u32 %v662
    %v664 = vextract.high.u32 %v662
    %v665 = vmul.u32 %v658, %v649
    %v666 = vadd.s32 %v661, %v663
    %vm667 = vc.u32 %v661, %v663
    %v668 = vadd.s32 %v664, 1
    %v669 = vsel %vm667, %v668, %v664
    %v670 = vadd.s32 %v665, %v669
    %v671 = vadd.s32 %v670, 536870912
    %v672 = vshrl.u32 %v671, 30
    %v673 = vshll.u32 %v672, 30
    %v674 = vsub.s32 %v670, %v673
    %vm675 = vcmp.lt.s32.totalorder %v674, 0
    %v676 = vsub.s32 0, %v674
    %v677 = vsel %vm675, %v676, %v674
    %v678 = vclz %v677
    %v679 = vsub.s32 %v678, 2
    %vm680 = vcmp.gt.s32.totalorder 0, %v679
    %v681 = vsel %vm680, 0, %v679
    %v682 = vsub.s32 32, %v681
    %v683 = vshll.u32 %v674, %v681
    %v684 = vshrl.u32 %v666, %v682
    %v685 = vor.u32 %v683, %v684
    %v686 = vsub.s32 4294967266, %v681
    %v687 = vadd.s32 %v686, 127
    %v688 = vshll.u32 %v687, 23
    %v689 = vor.u32 4788187, %v688
    %v690 = vand.u32 2147483647, %v689
    %v692 = vcvt.s32.f32 %v685
    %v693 = vmul.f32 %v692, %v690
    %v694 = vxor.u32 %v693, 2147483648
    %v695 = vsel %vm612, %v694, %v693
    %v696 = vsub.s32 4, %v672
    %v697 = vsel %vm612, %v696, %v672
    %v698 = vsel %vm611, %v190, %v695
    %v699 = vsel %vm611, 0, %v697
    %v700 = vcosq.f32.pop %v698
    %v701 = vsinq.f32.pop %v698
    %vm702 = vweird.f32 %v190
    %v703 = vadd.s32 %v699, 3
    %v704 = vand.u32 %v703, 3
    %vm705 = vcmp.lt.s32.totalorder %v704, 2
    %vm706 = vcmp.eq.s32.totalorder %v704, 0
    %v707 = vxor.u32 %v701, 2147483648
    %v708 = vsel %vm706, %v700, %v707
    %vm709 = vcmp.eq.s32.totalorder %v704, 2
    %v710 = vxor.u32 %v700, 2147483648
    %v711 = vsel %vm709, %v710, %v701
    %v712 = vsel %vm705, %v708, %v711
    %v713 = vsel %vm702, nan, %v712
    %v714 = vand.u32 2147483647, %v191
    %vm715 = vcmp.le.f32.partialorder %v714, 0.7853982
    %vm716 = vcmp.lt.s32.totalorder %v191, 0
    %v717 = vand.u32 %v191, 2139095040
    %v718 = vshrl.u32 %v717, 23
    %v719 = vsub.s32 %v718, 127
    %v720 = vand.u32 2147483647, %v191
    %v721 = vand.u32 %v720, 8388607
    %v722 = vor.u32 %v721, 8388608
    %v723 = vsub.s32 0, %v722
    %v724 = vadd.s32 %v719, 1
    %vm725 = vcmp.gt.s32.totalorder %v724, 0
    %v726 = vsel %vm725, %v724, 0
    %v727 = vshrl.u32 %v726, 5
    %v728 = vand.u32 %v726, 31
    %v729 = vsub.s32 32, %v728
    %v730 = vshrl.u32 683565275, %v729
    %v731 = vshll.u32 683565275, %v728
    %v732 = vshrl.u32 2475754826, %v729
    %v733 = vor.u32 %v731, %v732
    %v734 = vshll.u32 2475754826, %v728
    %v735 = vshrl.u32 2131351028, %v729
    %v736 = vor.u32 %v734, %v735
    %v737 = vshll.u32 2131351028, %v728
    %v738 = vshrl.u32 2102212464, %v729
    %v739 = vor.u32 %v737, %v738
    %v740 = vshll.u32 2102212464, %v728
    %v741 = vshrl.u32 920167782, %v729
    %v742 = vor.u32 %v740, %v741
    %v743 = vshll.u32 920167782, %v728
    %v744 = vshrl.u32 1326507024, %v729
    %v745 = vor.u32 %v743, %v744
    %vm746 = vcmp.lt.s32.totalorder %v727, 1
    %vm747 = vcmp.lt.s32.totalorder %v727, 2
    %vm748 = vcmp.lt.s32.totalorder %v727, 3
    %vm749 = vcmp.lt.s32.totalorder %v727, 4
    %v750 = vsel %vm746, %v730, %v733
    %v751 = vsel %vm749, %v739, 2102212464
    %v752 = vsel %vm748, %v736, %v751
    %v753 = vsel %vm747, %v750, %v752
    %v754 = vsel %vm746, %v733, %v736
    %v755 = vsel %vm749, %v742, 920167782
    %v756 = vsel %vm748, %v739, %v755
    %v757 = vsel %vm747, %v754, %v756
    %v758 = vsel %vm746, %v736, %v739
    %v759 = vsel %vm749, %v745, 1326507024
    %v760 = vsel %vm748, %v742, %v759
    %v761 = vsel %vm747, %v758, %v760
    %v762 = vshll.u32 %v722, 8
    %v763 = vmul.u32.u64.compose %v762, %v761
    %v764 = vextract.low.u32 %v763
    %v765 = vextract.high.u32 %v763
    %v766 = vmul.u32.u64.compose %v762, %v757
    %v767 = vextract.low.u32 %v766
    %v768 = vextract.high.u32 %v766
    %v769 = vmul.u32 %v762, %v753
    %v770 = vadd.s32 %v765, %v767
    %vm771 = vc.u32 %v765, %v767
    %v772 = vadd.s32 %v768, 1
    %v773 = vsel %vm771, %v772, %v768
    %v774 = vadd.s32 %v769, %v773
    %v775 = vadd.s32 %v774, 536870912
    %v776 = vshrl.u32 %v775, 30
    %v777 = vshll.u32 %v776, 30
    %v778 = vsub.s32 %v774, %v777
    %vm779 = vcmp.lt.s32.totalorder %v778, 0
    %v780 = vsub.s32 0, %v778
    %v781 = vsel %vm779, %v780, %v778
    %v782 = vclz %v781
    %v783 = vsub.s32 %v782, 2
    %vm784 = vcmp.gt.s32.totalorder 0, %v783
    %v785 = vsel %vm784, 0, %v783
    %v786 = vsub.s32 32, %v785
    %v787 = vshll.u32 %v778, %v785
    %v788 = vshrl.u32 %v770, %v786
    %v789 = vor.u32 %v787, %v788
    %v790 = vsub.s32 4294967266, %v785
    %v791 = vadd.s32 %v790, 127
    %v792 = vshll.u32 %v791, 23
    %v793 = vor.u32 4788187, %v792
    %v794 = vand.u32 2147483647, %v793
    %v796 = vcvt.s32.f32 %v789
    %v797 = vmul.f32 %v796, %v794
    %v798 = vxor.u32 %v797, 2147483648
    %v799 = vsel %vm716, %v798, %v797
    %v800 = vsub.s32 4, %v776
    %v801 = vsel %vm716, %v800, %v776
    %v802 = vsel %vm715, %v191, %v799
    %v803 = vsel %vm715, 0, %v801
    %v804 = vcosq.f32.pop %v802
    %v805 = vsinq.f32.pop %v802
    %vm806 = vweird.f32 %v191
    %v807 = vadd.s32 %v803, 3
    %v808 = vand.u32 %v807, 3
    %vm809 = vcmp.lt.s32.totalorder %v808, 2
    %vm810 = vcmp.eq.s32.totalorder %v808, 0
    %v811 = vxor.u32 %v805, 2147483648
    %v812 = vsel %vm810, %v804, %v811
    %vm813 = vcmp.eq.s32.totalorder %v808, 2
    %v814 = vxor.u32 %v804, 2147483648
    %v815 = vsel %vm813, %v814, %v805
    %v816 = vsel %vm809, %v812, %v815
    %v817 = vsel %vm806, nan, %v816
    %v818 = vand.u32 2147483647, %v192
    %vm819 = vcmp.le.f32.partialorder %v818, 0.7853982
    %vm820 = vcmp.lt.s32.totalorder %v192, 0
    %v821 = vand.u32 %v192, 2139095040
    %v822 = vshrl.u32 %v821, 23
    %v823 = vsub.s32 %v822, 127
    %v824 = vand.u32 2147483647, %v192
    %v825 = vand.u32 %v824, 8388607
    %v826 = vor.u32 %v825, 8388608
    %v827 = vsub.s32 0, %v826
    %v828 = vadd.s32 %v823, 1
    %vm829 = vcmp.gt.s32.totalorder %v828, 0
    %v830 = vsel %vm829, %v828, 0
    %v831 = vshrl.u32 %v830, 5
    %v832 = vand.u32 %v830, 31
    %v833 = vsub.s32 32, %v832
    %v834 = vshrl.u32 683565275, %v833
    %v835 = vshll.u32 683565275, %v832
    %v836 = vshrl.u32 2475754826, %v833
    %v837 = vor.u32 %v835, %v836
    %v838 = vshll.u32 2475754826, %v832
    %v839 = vshrl.u32 2131351028, %v833
    %v840 = vor.u32 %v838, %v839
    %v841 = vshll.u32 2131351028, %v832
    %v842 = vshrl.u32 2102212464, %v833
    %v843 = vor.u32 %v841, %v842
    %v844 = vshll.u32 2102212464, %v832
    %v845 = vshrl.u32 920167782, %v833
    %v846 = vor.u32 %v844, %v845
    %v847 = vshll.u32 920167782, %v832
    %v848 = vshrl.u32 1326507024, %v833
    %v849 = vor.u32 %v847, %v848
    %vm850 = vcmp.lt.s32.totalorder %v831, 1
    %vm851 = vcmp.lt.s32.totalorder %v831, 2
    %vm852 = vcmp.lt.s32.totalorder %v831, 3
    %vm853 = vcmp.lt.s32.totalorder %v831, 4
    %v854 = vsel %vm850, %v834, %v837
    %v855 = vsel %vm853, %v843, 2102212464
    %v856 = vsel %vm852, %v840, %v855
    %v857 = vsel %vm851, %v854, %v856
    %v858 = vsel %vm850, %v837, %v840
    %v859 = vsel %vm853, %v846, 920167782
    %v860 = vsel %vm852, %v843, %v859
    %v861 = vsel %vm851, %v858, %v860
    %v862 = vsel %vm850, %v840, %v843
    %v863 = vsel %vm853, %v849, 1326507024
    %v864 = vsel %vm852, %v846, %v863
    %v865 = vsel %vm851, %v862, %v864
    %v866 = vshll.u32 %v826, 8
    %v867 = vmul.u32.u64.compose %v866, %v865
    %v868 = vextract.low.u32 %v867
    %v869 = vextract.high.u32 %v867
    %v870 = vmul.u32.u64.compose %v866, %v861
    %v871 = vextract.low.u32 %v870
    %v872 = vextract.high.u32 %v870
    %v873 = vmul.u32 %v866, %v857
    %v874 = vadd.s32 %v869, %v871
    %vm875 = vc.u32 %v869, %v871
    %v876 = vadd.s32 %v872, 1
    %v877 = vsel %vm875, %v876, %v872
    %v878 = vadd.s32 %v873, %v877
    %v879 = vadd.s32 %v878, 536870912
    %v880 = vshrl.u32 %v879, 30
    %v881 = vshll.u32 %v880, 30
    %v882 = vsub.s32 %v878, %v881
    %vm883 = vcmp.lt.s32.totalorder %v882, 0
    %v884 = vsub.s32 0, %v882
    %v885 = vsel %vm883, %v884, %v882
    %v886 = vclz %v885
    %v887 = vsub.s32 %v886, 2
    %vm888 = vcmp.gt.s32.totalorder 0, %v887
    %v889 = vsel %vm888, 0, %v887
    %v890 = vsub.s32 32, %v889
    %v891 = vshll.u32 %v882, %v889
    %v892 = vshrl.u32 %v874, %v890
    %v893 = vor.u32 %v891, %v892
    %v894 = vsub.s32 4294967266, %v889
    %v895 = vadd.s32 %v894, 127
    %v896 = vshll.u32 %v895, 23
    %v897 = vor.u32 4788187, %v896
    %v898 = vand.u32 2147483647, %v897
    %v900 = vcvt.s32.f32 %v893
    %v901 = vmul.f32 %v900, %v898
    %v902 = vxor.u32 %v901, 2147483648
    %v903 = vsel %vm820, %v902, %v901
    %v904 = vsub.s32 4, %v880
    %v905 = vsel %vm820, %v904, %v880
    %v906 = vsel %vm819, %v192, %v903
    %v907 = vsel %vm819, 0, %v905
    %v908 = vcosq.f32.pop %v906
    %v909 = vsinq.f32.pop %v906
    %vm910 = vweird.f32 %v192
    %v911 = vadd.s32 %v907, 3
    %v912 = vand.u32 %v911, 3
    %vm913 = vcmp.lt.s32.totalorder %v912, 2
    %vm914 = vcmp.eq.s32.totalorder %v912, 0
    %v915 = vxor.u32 %v909, 2147483648
    %v916 = vsel %vm914, %v908, %v915
    %vm917 = vcmp.eq.s32.totalorder %v912, 2
    %v918 = vxor.u32 %v908, 2147483648
    %v919 = vsel %vm917, %v918, %v909
    %v920 = vsel %vm913, %v916, %v919
    %v921 = vsel %vm910, nan, %v920
    %v922 = vand.u32 2147483647, %v193
    %vm923 = vcmp.le.f32.partialorder %v922, 0.7853982
    %vm924 = vcmp.lt.s32.totalorder %v193, 0
    %v925 = vand.u32 %v193, 2139095040
    %v926 = vshrl.u32 %v925, 23
    %v927 = vsub.s32 %v926, 127
    %v928 = vand.u32 2147483647, %v193
    %v929 = vand.u32 %v928, 8388607
    %v930 = vor.u32 %v929, 8388608
    %v931 = vsub.s32 0, %v930
    %v932 = vadd.s32 %v927, 1
    %vm933 = vcmp.gt.s32.totalorder %v932, 0
    %v934 = vsel %vm933, %v932, 0
    %v935 = vshrl.u32 %v934, 5
    %v936 = vand.u32 %v934, 31
    %v937 = vsub.s32 32, %v936
    %v938 = vshrl.u32 683565275, %v937
    %v939 = vshll.u32 683565275, %v936
    %v940 = vshrl.u32 2475754826, %v937
    %v941 = vor.u32 %v939, %v940
    %v942 = vshll.u32 2475754826, %v936
    %v943 = vshrl.u32 2131351028, %v937
    %v944 = vor.u32 %v942, %v943
    %v945 = vshll.u32 2131351028, %v936
    %v946 = vshrl.u32 2102212464, %v937
    %v947 = vor.u32 %v945, %v946
    %v948 = vshll.u32 2102212464, %v936
    %v949 = vshrl.u32 920167782, %v937
    %v950 = vor.u32 %v948, %v949
    %v951 = vshll.u32 920167782, %v936
    %v952 = vshrl.u32 1326507024, %v937
    %v953 = vor.u32 %v951, %v952
    %vm954 = vcmp.lt.s32.totalorder %v935, 1
    %vm955 = vcmp.lt.s32.totalorder %v935, 2
    %vm956 = vcmp.lt.s32.totalorder %v935, 3
    %vm957 = vcmp.lt.s32.totalorder %v935, 4
    %v958 = vsel %vm954, %v938, %v941
    %v959 = vsel %vm957, %v947, 2102212464
    %v960 = vsel %vm956, %v944, %v959
    %v961 = vsel %vm955, %v958, %v960
    %v962 = vsel %vm954, %v941, %v944
    %v963 = vsel %vm957, %v950, 920167782
    %v964 = vsel %vm956, %v947, %v963
    %v965 = vsel %vm955, %v962, %v964
    %v966 = vsel %vm954, %v944, %v947
    %v967 = vsel %vm957, %v953, 1326507024
    %v968 = vsel %vm956, %v950, %v967
    %v969 = vsel %vm955, %v966, %v968
    %v970 = vshll.u32 %v930, 8
    %v971 = vmul.u32.u64.compose %v970, %v969
    %v972 = vextract.low.u32 %v971
    %v973 = vextract.high.u32 %v971
    %v974 = vmul.u32.u64.compose %v970, %v965
    %v975 = vextract.low.u32 %v974
    %v976 = vextract.high.u32 %v974
    %v977 = vmul.u32 %v970, %v961
    %v978 = vadd.s32 %v973, %v975
    %vm979 = vc.u32 %v973, %v975
    %v980 = vadd.s32 %v976, 1
    %v981 = vsel %vm979, %v980, %v976
    %v982 = vadd.s32 %v977, %v981
    %v983 = vadd.s32 %v982, 536870912
    %v984 = vshrl.u32 %v983, 30
    %v985 = vshll.u32 %v984, 30
    %v986 = vsub.s32 %v982, %v985
    %vm987 = vcmp.lt.s32.totalorder %v986, 0
    %v988 = vsub.s32 0, %v986
    %v989 = vsel %vm987, %v988, %v986
    %v990 = vclz %v989
    %v991 = vsub.s32 %v990, 2
    %vm992 = vcmp.gt.s32.totalorder 0, %v991
    %v993 = vsel %vm992, 0, %v991
    %v994 = vsub.s32 32, %v993
    %v995 = vshll.u32 %v986, %v993
    %v996 = vshrl.u32 %v978, %v994
    %v997 = vor.u32 %v995, %v996
    %v998 = vsub.s32 4294967266, %v993
    %v999 = vadd.s32 %v998, 127
    %v1000 = vshll.u32 %v999, 23
    %v1001 = vor.u32 4788187, %v1000
    %v1002 = vand.u32 2147483647, %v1001
    %v1004 = vcvt.s32.f32 %v997
    %v1005 = vmul.f32 %v1004, %v1002
    %v1006 = vxor.u32 %v1005, 2147483648
    %v1007 = vsel %vm924, %v1006, %v1005
    %v1008 = vsub.s32 4, %v984
    %v1009 = vsel %vm924, %v1008, %v984
    %v1010 = vsel %vm923, %v193, %v1007
    %v1011 = vsel %vm923, 0, %v1009
    %v1012 = vcosq.f32.pop %v1010
    %v1013 = vsinq.f32.pop %v1010
    %vm1014 = vweird.f32 %v193
    %v1015 = vadd.s32 %v1011, 3
    %v1016 = vand.u32 %v1015, 3
    %vm1017 = vcmp.lt.s32.totalorder %v1016, 2
    %vm1018 = vcmp.eq.s32.totalorder %v1016, 0
    %v1019 = vxor.u32 %v1013, 2147483648
    %v1020 = vsel %vm1018, %v1012, %v1019
    %vm1021 = vcmp.eq.s32.totalorder %v1016, 2
    %v1022 = vxor.u32 %v1012, 2147483648
    %v1023 = vsel %vm1021, %v1022, %v1013
    %v1024 = vsel %vm1017, %v1020, %v1023
    %v1025 = vsel %vm1014, nan, %v1024
    %v1026 = vld [vmem:[%s3] sm:$0xf]
    %v1027 = vld [vmem:[%s3 + $0x4] sm:$0xf]
    %v1028 = vld [vmem:[%s3 + $0x8] sm:$0xf]
    %v1029 = vld [vmem:[%s3 + $0xc] sm:$0xf]
    %v1030 = vld [vmem:[%s4] sm:$0xff]
    %v1031 = vld [vmem:[%s4 + $0x8] sm:$0xff]
    %v1032 = vld [vmem:[%s4 + $0x10] sm:$0xff]
    %v1033 = vld [vmem:[%s4 + $0x18] sm:$0xff]
    %v1034 = vpack.c.bf16 %v505, %v297
    %v1035 = vpack.c.bf16 %v609, %v401
    %v1036 = vpack.c.bf16 %v921, %v713
    %v1037 = vpack.c.bf16 %v1025, %v817
    %1039 = vset.pattern.permute.xlu0 0
    %1040 = vperm.xlu0 %1039, %v1030
    %v1041 = vpop.permute.xlu0 %1040
    %1044 = vset.pattern.permute.xlu0 0
    %1045 = vperm.xlu0 %1044, %v1031
    %v1046 = vpop.permute.xlu0 %1045
    %1049 = vset.pattern.permute.xlu0 0
    %1050 = vperm.xlu0 %1049, %v1032
    %v1051 = vpop.permute.xlu0 %1050
    %1054 = vset.pattern.permute.xlu0 0
    %1055 = vperm.xlu0 %1054, %v1033
    %v1056 = vpop.permute.xlu0 %1055
    %v1062 = vunpack.c.l.b16 %v1026
    %v1063 = vunpack.c.l.b16 %v1027
    %v1064 = vunpack.c.l.b16 %v1028
    %v1065 = vunpack.c.l.b16 %v1029
    %v1066 = vpack.c.b16 %v1063, %v1062
    %v1067 = vpack.c.b16 %v1065, %v1064
    %vm1068 = vcmask 261120
    %v1070 = vsel %vm1068, %v1066, 0
    %v1073 = vsel %vm1068, %v1067, 0
    %1075 = vmatprep.subr.bf16.mxu0 %v1035
    %1076 = vmatpush1.bf16.msra.mxu0 %v1034
    %1077 = vmatprep.subr.bf16.mxu0 %v1037
    %1078 = vmatpush1.bf16.msra.mxu0 %v1036
    %1079 = vmatprep.subr.bf16.mxu0 0
    %1080 = vmatpush1.bf16.msra.mxu0 0
    %1081 = vmatprep.subr.bf16.mxu0 0
    %1082 = vmatpush1.bf16.msra.mxu0 0
    %1083 = vmatprep.subr.bf16.mxu0 0
    %1084 = vmatpush1.bf16.msra.mxu0 0
    %1085 = vmatprep.subr.bf16.mxu0 0
    %1086 = vmatpush1.bf16.msra.mxu0 0
    %1087 = vmatprep.subr.bf16.mxu0 0
    %1088 = vmatpush1.bf16.msra.mxu0 0
    %1089 = vmatprep.subr.bf16.mxu0 0
    %1090 = vmatpush1.bf16.msra.mxu0 0
    %1091 = vmatprep.subr.bf16.mxu0 0
    %1092 = vmatpush1.bf16.msra.mxu0 0
    %1093 = vmatprep.subr.bf16.mxu0 0
    %1094 = vmatpush1.bf16.msra.mxu0 0
    %1095 = vmatprep.subr.bf16.mxu0 0
    %1096 = vmatpush1.bf16.msra.mxu0 0
    %1097 = vmatprep.subr.bf16.mxu0 0
    %1098 = vmatpush1.bf16.msra.mxu0 0
    %1099 = vmatprep.subr.bf16.mxu0 0
    %1100 = vmatpush1.bf16.msra.mxu0 0
    %1101 = vmatprep.subr.bf16.mxu0 0
    %1102 = vmatpush1.bf16.msra.mxu0 0
    %1103 = vmatprep.subr.bf16.mxu0 0
    %1104 = vmatpush1.bf16.msra.mxu0 0
    %1105 = vmatprep.subr.bf16.mxu0 0
    %1106 = vmatpush1.bf16.msra.mxu0 0
    %1107 = vmatprep.mubr.bf16.mxu0 0
    %1108 = vmatmul.mubr.bf16.gmra.mrb[0].mxu0 %v1070
    %v1109 = vpop.f32.mrb[0].mxu0
    %v1110 = vadd.f32 %v1041, %v1109
    %v1111 = vpop.f32.mrb[0].mxu0
    %v1112 = vadd.f32 %v1041, %v1111
    %v1113 = vpop.f32.mrb[0].mxu0
    %v1114 = vadd.f32 %v1046, %v1113
    %v1115 = vpop.f32.mrb[0].mxu0
    %v1116 = vadd.f32 %v1046, %v1115
    %1117 = vmatprep.mubr.bf16.mxu0 0
    %1118 = vmatmul.mubr.bf16.gmra.mrb[0].mxu0 %v1073
    %v1119 = vpop.f32.mrb[0].mxu0
    %v1120 = vadd.f32 %v1051, %v1119
    %v1121 = vpop.f32.mrb[0].mxu0
    %v1122 = vadd.f32 %v1051, %v1121
    %v1123 = vpop.f32.mrb[0].mxu0
    %v1124 = vadd.f32 %v1056, %v1123
    %v1125 = vpop.f32.mrb[0].mxu0
    %v1126 = vadd.f32 %v1056, %v1125
    %1127 = vdwg.mxu0
    %v1128 = vand.u32 2147483647, %v1110
    %v1129 = vand.u32 2147483647, %v1112
    %v1130 = vand.u32 2147483647, %v1114
    %v1131 = vand.u32 2147483647, %v1116
    %v1132 = vand.u32 2147483647, %v1120
    %v1133 = vand.u32 2147483647, %v1122
    %v1134 = vand.u32 2147483647, %v1124
    %v1135 = vand.u32 2147483647, %v1126
    %v1136 = vadd.f32 %v1128, 1.0
    %v1137 = vadd.f32 %v1129, 1.0
    %v1138 = vadd.f32 %v1130, 1.0
    %v1139 = vadd.f32 %v1131, 1.0
    %v1140 = vadd.f32 %v1132, 1.0
    %v1141 = vadd.f32 %v1133, 1.0
    %v1142 = vadd.f32 %v1134, 1.0
    %v1143 = vadd.f32 %v1135, 1.0
    %v1144 = vmul.f32 %v1136, 30.0
    %v1145 = vmul.f32 %v1137, 30.0
    %v1146 = vmul.f32 %v1138, 30.0
    %v1147 = vmul.f32 %v1139, 30.0
    %v1148 = vmul.f32 %v1140, 30.0
    %v1149 = vmul.f32 %v1141, 30.0
    %v1150 = vmul.f32 %v1142, 30.0
    %v1151 = vmul.f32 %v1143, 30.0
    %v1152 = vmul.f32 %v1144, %v1110
    %v1153 = vmul.f32 %v1145, %v1112
    %v1154 = vmul.f32 %v1146, %v1114
    %v1155 = vmul.f32 %v1147, %v1116
    %v1156 = vmul.f32 %v1148, %v1120
    %v1157 = vmul.f32 %v1149, %v1122
    %v1158 = vmul.f32 %v1150, %v1124
    %v1159 = vmul.f32 %v1151, %v1126
    %v1160 = vand.u32 2147483647, %v1152
    %vm1161 = vcmp.le.f32.partialorder %v1160, 0.7853982
    %vm1162 = vcmp.lt.s32.totalorder %v1152, 0
    %v1163 = vand.u32 %v1152, 2139095040
    %v1164 = vshrl.u32 %v1163, 23
    %v1165 = vsub.s32 %v1164, 127
    %v1166 = vand.u32 2147483647, %v1152
    %v1167 = vand.u32 %v1166, 8388607
    %v1168 = vor.u32 %v1167, 8388608
    %v1169 = vsub.s32 0, %v1168
    %v1170 = vadd.s32 %v1165, 1
    %vm1171 = vcmp.gt.s32.totalorder %v1170, 0
    %v1172 = vsel %vm1171, %v1170, 0
    %v1173 = vshrl.u32 %v1172, 5
    %v1174 = vand.u32 %v1172, 31
    %v1175 = vsub.s32 32, %v1174
    %v1176 = vshrl.u32 683565275, %v1175
    %v1177 = vshll.u32 683565275, %v1174
    %v1178 = vshrl.u32 2475754826, %v1175
    %v1179 = vor.u32 %v1177, %v1178
    %v1180 = vshll.u32 2475754826, %v1174
    %v1181 = vshrl.u32 2131351028, %v1175
    %v1182 = vor.u32 %v1180, %v1181
    %v1183 = vshll.u32 2131351028, %v1174
    %v1184 = vshrl.u32 2102212464, %v1175
    %v1185 = vor.u32 %v1183, %v1184
    %v1186 = vshll.u32 2102212464, %v1174
    %v1187 = vshrl.u32 920167782, %v1175
    %v1188 = vor.u32 %v1186, %v1187
    %v1189 = vshll.u32 920167782, %v1174
    %v1190 = vshrl.u32 1326507024, %v1175
    %v1191 = vor.u32 %v1189, %v1190
    %vm1192 = vcmp.lt.s32.totalorder %v1173, 1
    %vm1193 = vcmp.lt.s32.totalorder %v1173, 2
    %vm1194 = vcmp.lt.s32.totalorder %v1173, 3
    %vm1195 = vcmp.lt.s32.totalorder %v1173, 4
    %v1196 = vsel %vm1192, %v1176, %v1179
    %v1197 = vsel %vm1195, %v1185, 2102212464
    %v1198 = vsel %vm1194, %v1182, %v1197
    %v1199 = vsel %vm1193, %v1196, %v1198
    %v1200 = vsel %vm1192, %v1179, %v1182
    %v1201 = vsel %vm1195, %v1188, 920167782
    %v1202 = vsel %vm1194, %v1185, %v1201
    %v1203 = vsel %vm1193, %v1200, %v1202
    %v1204 = vsel %vm1192, %v1182, %v1185
    %v1205 = vsel %vm1195, %v1191, 1326507024
    %v1206 = vsel %vm1194, %v1188, %v1205
    %v1207 = vsel %vm1193, %v1204, %v1206
    %v1208 = vshll.u32 %v1168, 8
    %v1209 = vmul.u32.u64.compose %v1208, %v1207
    %v1210 = vextract.low.u32 %v1209
    %v1211 = vextract.high.u32 %v1209
    %v1212 = vmul.u32.u64.compose %v1208, %v1203
    %v1213 = vextract.low.u32 %v1212
    %v1214 = vextract.high.u32 %v1212
    %v1215 = vmul.u32 %v1208, %v1199
    %v1216 = vadd.s32 %v1211, %v1213
    %vm1217 = vc.u32 %v1211, %v1213
    %v1218 = vadd.s32 %v1214, 1
    %v1219 = vsel %vm1217, %v1218, %v1214
    %v1220 = vadd.s32 %v1215, %v1219
    %v1221 = vadd.s32 %v1220, 536870912
    %v1222 = vshrl.u32 %v1221, 30
    %v1223 = vshll.u32 %v1222, 30
    %v1224 = vsub.s32 %v1220, %v1223
    %vm1225 = vcmp.lt.s32.totalorder %v1224, 0
    %v1226 = vsub.s32 0, %v1224
    %v1227 = vsel %vm1225, %v1226, %v1224
    %v1228 = vclz %v1227
    %v1229 = vsub.s32 %v1228, 2
    %vm1230 = vcmp.gt.s32.totalorder 0, %v1229
    %v1231 = vsel %vm1230, 0, %v1229
    %v1232 = vsub.s32 32, %v1231
    %v1233 = vshll.u32 %v1224, %v1231
    %v1234 = vshrl.u32 %v1216, %v1232
    %v1235 = vor.u32 %v1233, %v1234
    %v1236 = vsub.s32 4294967266, %v1231
    %v1237 = vadd.s32 %v1236, 127
    %v1238 = vshll.u32 %v1237, 23
    %v1239 = vor.u32 4788187, %v1238
    %v1240 = vand.u32 2147483647, %v1239
    %v1242 = vcvt.s32.f32 %v1235
    %v1243 = vmul.f32 %v1242, %v1240
    %v1244 = vxor.u32 %v1243, 2147483648
    %v1245 = vsel %vm1162, %v1244, %v1243
    %v1246 = vsub.s32 4, %v1222
    %v1247 = vsel %vm1162, %v1246, %v1222
    %v1248 = vsel %vm1161, %v1152, %v1245
    %v1249 = vsel %vm1161, 0, %v1247
    %v1250 = vcosq.f32.pop %v1248
    %v1251 = vsinq.f32.pop %v1248
    %vm1252 = vweird.f32 %v1152
    %v1253 = vadd.s32 %v1249, 3
    %v1254 = vand.u32 %v1253, 3
    %vm1255 = vcmp.lt.s32.totalorder %v1254, 2
    %vm1256 = vcmp.eq.s32.totalorder %v1254, 0
    %v1257 = vxor.u32 %v1251, 2147483648
    %v1258 = vsel %vm1256, %v1250, %v1257
    %vm1259 = vcmp.eq.s32.totalorder %v1254, 2
    %v1260 = vxor.u32 %v1250, 2147483648
    %v1261 = vsel %vm1259, %v1260, %v1251
    %v1262 = vsel %vm1255, %v1258, %v1261
    %v1263 = vsel %vm1252, nan, %v1262
    %v1264 = vand.u32 2147483647, %v1153
    %vm1265 = vcmp.le.f32.partialorder %v1264, 0.7853982
    %vm1266 = vcmp.lt.s32.totalorder %v1153, 0
    %v1267 = vand.u32 %v1153, 2139095040
    %v1268 = vshrl.u32 %v1267, 23
    %v1269 = vsub.s32 %v1268, 127
    %v1270 = vand.u32 2147483647, %v1153
    %v1271 = vand.u32 %v1270, 8388607
    %v1272 = vor.u32 %v1271, 8388608
    %v1273 = vsub.s32 0, %v1272
    %v1274 = vadd.s32 %v1269, 1
    %vm1275 = vcmp.gt.s32.totalorder %v1274, 0
    %v1276 = vsel %vm1275, %v1274, 0
    %v1277 = vshrl.u32 %v1276, 5
    %v1278 = vand.u32 %v1276, 31
    %v1279 = vsub.s32 32, %v1278
    %v1280 = vshrl.u32 683565275, %v1279
    %v1281 = vshll.u32 683565275, %v1278
    %v1282 = vshrl.u32 2475754826, %v1279
    %v1283 = vor.u32 %v1281, %v1282
    %v1284 = vshll.u32 2475754826, %v1278
    %v1285 = vshrl.u32 2131351028, %v1279
    %v1286 = vor.u32 %v1284, %v1285
    %v1287 = vshll.u32 2131351028, %v1278
    %v1288 = vshrl.u32 2102212464, %v1279
    %v1289 = vor.u32 %v1287, %v1288
    %v1290 = vshll.u32 2102212464, %v1278
    %v1291 = vshrl.u32 920167782, %v1279
    %v1292 = vor.u32 %v1290, %v1291
    %v1293 = vshll.u32 920167782, %v1278
    %v1294 = vshrl.u32 1326507024, %v1279
    %v1295 = vor.u32 %v1293, %v1294
    %vm1296 = vcmp.lt.s32.totalorder %v1277, 1
    %vm1297 = vcmp.lt.s32.totalorder %v1277, 2
    %vm1298 = vcmp.lt.s32.totalorder %v1277, 3
    %vm1299 = vcmp.lt.s32.totalorder %v1277, 4
    %v1300 = vsel %vm1296, %v1280, %v1283
    %v1301 = vsel %vm1299, %v1289, 2102212464
    %v1302 = vsel %vm1298, %v1286, %v1301
    %v1303 = vsel %vm1297, %v1300, %v1302
    %v1304 = vsel %vm1296, %v1283, %v1286
    %v1305 = vsel %vm1299, %v1292, 920167782
    %v1306 = vsel %vm1298, %v1289, %v1305
    %v1307 = vsel %vm1297, %v1304, %v1306
    %v1308 = vsel %vm1296, %v1286, %v1289
    %v1309 = vsel %vm1299, %v1295, 1326507024
    %v1310 = vsel %vm1298, %v1292, %v1309
    %v1311 = vsel %vm1297, %v1308, %v1310
    %v1312 = vshll.u32 %v1272, 8
    %v1313 = vmul.u32.u64.compose %v1312, %v1311
    %v1314 = vextract.low.u32 %v1313
    %v1315 = vextract.high.u32 %v1313
    %v1316 = vmul.u32.u64.compose %v1312, %v1307
    %v1317 = vextract.low.u32 %v1316
    %v1318 = vextract.high.u32 %v1316
    %v1319 = vmul.u32 %v1312, %v1303
    %v1320 = vadd.s32 %v1315, %v1317
    %vm1321 = vc.u32 %v1315, %v1317
    %v1322 = vadd.s32 %v1318, 1
    %v1323 = vsel %vm1321, %v1322, %v1318
    %v1324 = vadd.s32 %v1319, %v1323
    %v1325 = vadd.s32 %v1324, 536870912
    %v1326 = vshrl.u32 %v1325, 30
    %v1327 = vshll.u32 %v1326, 30
    %v1328 = vsub.s32 %v1324, %v1327
    %vm1329 = vcmp.lt.s32.totalorder %v1328, 0
    %v1330 = vsub.s32 0, %v1328
    %v1331 = vsel %vm1329, %v1330, %v1328
    %v1332 = vclz %v1331
    %v1333 = vsub.s32 %v1332, 2
    %vm1334 = vcmp.gt.s32.totalorder 0, %v1333
    %v1335 = vsel %vm1334, 0, %v1333
    %v1336 = vsub.s32 32, %v1335
    %v1337 = vshll.u32 %v1328, %v1335
    %v1338 = vshrl.u32 %v1320, %v1336
    %v1339 = vor.u32 %v1337, %v1338
    %v1340 = vsub.s32 4294967266, %v1335
    %v1341 = vadd.s32 %v1340, 127
    %v1342 = vshll.u32 %v1341, 23
    %v1343 = vor.u32 4788187, %v1342
    %v1344 = vand.u32 2147483647, %v1343
    %v1346 = vcvt.s32.f32 %v1339
    %v1347 = vmul.f32 %v1346, %v1344
    %v1348 = vxor.u32 %v1347, 2147483648
    %v1349 = vsel %vm1266, %v1348, %v1347
    %v1350 = vsub.s32 4, %v1326
    %v1351 = vsel %vm1266, %v1350, %v1326
    %v1352 = vsel %vm1265, %v1153, %v1349
    %v1353 = vsel %vm1265, 0, %v1351
    %v1354 = vcosq.f32.pop %v1352
    %v1355 = vsinq.f32.pop %v1352
    %vm1356 = vweird.f32 %v1153
    %v1357 = vadd.s32 %v1353, 3
    %v1358 = vand.u32 %v1357, 3
    %vm1359 = vcmp.lt.s32.totalorder %v1358, 2
    %vm1360 = vcmp.eq.s32.totalorder %v1358, 0
    %v1361 = vxor.u32 %v1355, 2147483648
    %v1362 = vsel %vm1360, %v1354, %v1361
    %vm1363 = vcmp.eq.s32.totalorder %v1358, 2
    %v1364 = vxor.u32 %v1354, 2147483648
    %v1365 = vsel %vm1363, %v1364, %v1355
    %v1366 = vsel %vm1359, %v1362, %v1365
    %v1367 = vsel %vm1356, nan, %v1366
    %v1368 = vand.u32 2147483647, %v1154
    %vm1369 = vcmp.le.f32.partialorder %v1368, 0.7853982
    %vm1370 = vcmp.lt.s32.totalorder %v1154, 0
    %v1371 = vand.u32 %v1154, 2139095040
    %v1372 = vshrl.u32 %v1371, 23
    %v1373 = vsub.s32 %v1372, 127
    %v1374 = vand.u32 2147483647, %v1154
    %v1375 = vand.u32 %v1374, 8388607
    %v1376 = vor.u32 %v1375, 8388608
    %v1377 = vsub.s32 0, %v1376
    %v1378 = vadd.s32 %v1373, 1
    %vm1379 = vcmp.gt.s32.totalorder %v1378, 0
    %v1380 = vsel %vm1379, %v1378, 0
    %v1381 = vshrl.u32 %v1380, 5
    %v1382 = vand.u32 %v1380, 31
    %v1383 = vsub.s32 32, %v1382
    %v1384 = vshrl.u32 683565275, %v1383
    %v1385 = vshll.u32 683565275, %v1382
    %v1386 = vshrl.u32 2475754826, %v1383
    %v1387 = vor.u32 %v1385, %v1386
    %v1388 = vshll.u32 2475754826, %v1382
    %v1389 = vshrl.u32 2131351028, %v1383
    %v1390 = vor.u32 %v1388, %v1389
    %v1391 = vshll.u32 2131351028, %v1382
    %v1392 = vshrl.u32 2102212464, %v1383
    %v1393 = vor.u32 %v1391, %v1392
    %v1394 = vshll.u32 2102212464, %v1382
    %v1395 = vshrl.u32 920167782, %v1383
    %v1396 = vor.u32 %v1394, %v1395
    %v1397 = vshll.u32 920167782, %v1382
    %v1398 = vshrl.u32 1326507024, %v1383
    %v1399 = vor.u32 %v1397, %v1398
    %vm1400 = vcmp.lt.s32.totalorder %v1381, 1
    %vm1401 = vcmp.lt.s32.totalorder %v1381, 2
    %vm1402 = vcmp.lt.s32.totalorder %v1381, 3
    %vm1403 = vcmp.lt.s32.totalorder %v1381, 4
    %v1404 = vsel %vm1400, %v1384, %v1387
    %v1405 = vsel %vm1403, %v1393, 2102212464
    %v1406 = vsel %vm1402, %v1390, %v1405
    %v1407 = vsel %vm1401, %v1404, %v1406
    %v1408 = vsel %vm1400, %v1387, %v1390
    %v1409 = vsel %vm1403, %v1396, 920167782
    %v1410 = vsel %vm1402, %v1393, %v1409
    %v1411 = vsel %vm1401, %v1408, %v1410
    %v1412 = vsel %vm1400, %v1390, %v1393
    %v1413 = vsel %vm1403, %v1399, 1326507024
    %v1414 = vsel %vm1402, %v1396, %v1413
    %v1415 = vsel %vm1401, %v1412, %v1414
    %v1416 = vshll.u32 %v1376, 8
    %v1417 = vmul.u32.u64.compose %v1416, %v1415
    %v1418 = vextract.low.u32 %v1417
    %v1419 = vextract.high.u32 %v1417
    %v1420 = vmul.u32.u64.compose %v1416, %v1411
    %v1421 = vextract.low.u32 %v1420
    %v1422 = vextract.high.u32 %v1420
    %v1423 = vmul.u32 %v1416, %v1407
    %v1424 = vadd.s32 %v1419, %v1421
    %vm1425 = vc.u32 %v1419, %v1421
    %v1426 = vadd.s32 %v1422, 1
    %v1427 = vsel %vm1425, %v1426, %v1422
    %v1428 = vadd.s32 %v1423, %v1427
    %v1429 = vadd.s32 %v1428, 536870912
    %v1430 = vshrl.u32 %v1429, 30
    %v1431 = vshll.u32 %v1430, 30
    %v1432 = vsub.s32 %v1428, %v1431
    %vm1433 = vcmp.lt.s32.totalorder %v1432, 0
    %v1434 = vsub.s32 0, %v1432
    %v1435 = vsel %vm1433, %v1434, %v1432
    %v1436 = vclz %v1435
    %v1437 = vsub.s32 %v1436, 2
    %vm1438 = vcmp.gt.s32.totalorder 0, %v1437
    %v1439 = vsel %vm1438, 0, %v1437
    %v1440 = vsub.s32 32, %v1439
    %v1441 = vshll.u32 %v1432, %v1439
    %v1442 = vshrl.u32 %v1424, %v1440
    %v1443 = vor.u32 %v1441, %v1442
    %v1444 = vsub.s32 4294967266, %v1439
    %v1445 = vadd.s32 %v1444, 127
    %v1446 = vshll.u32 %v1445, 23
    %v1447 = vor.u32 4788187, %v1446
    %v1448 = vand.u32 2147483647, %v1447
    %v1450 = vcvt.s32.f32 %v1443
    %v1451 = vmul.f32 %v1450, %v1448
    %v1452 = vxor.u32 %v1451, 2147483648
    %v1453 = vsel %vm1370, %v1452, %v1451
    %v1454 = vsub.s32 4, %v1430
    %v1455 = vsel %vm1370, %v1454, %v1430
    %v1456 = vsel %vm1369, %v1154, %v1453
    %v1457 = vsel %vm1369, 0, %v1455
    %v1458 = vcosq.f32.pop %v1456
    %v1459 = vsinq.f32.pop %v1456
    %vm1460 = vweird.f32 %v1154
    %v1461 = vadd.s32 %v1457, 3
    %v1462 = vand.u32 %v1461, 3
    %vm1463 = vcmp.lt.s32.totalorder %v1462, 2
    %vm1464 = vcmp.eq.s32.totalorder %v1462, 0
    %v1465 = vxor.u32 %v1459, 2147483648
    %v1466 = vsel %vm1464, %v1458, %v1465
    %vm1467 = vcmp.eq.s32.totalorder %v1462, 2
    %v1468 = vxor.u32 %v1458, 2147483648
    %v1469 = vsel %vm1467, %v1468, %v1459
    %v1470 = vsel %vm1463, %v1466, %v1469
    %v1471 = vsel %vm1460, nan, %v1470
    %v1472 = vand.u32 2147483647, %v1155
    %vm1473 = vcmp.le.f32.partialorder %v1472, 0.7853982
    %vm1474 = vcmp.lt.s32.totalorder %v1155, 0
    %v1475 = vand.u32 %v1155, 2139095040
    %v1476 = vshrl.u32 %v1475, 23
    %v1477 = vsub.s32 %v1476, 127
    %v1478 = vand.u32 2147483647, %v1155
    %v1479 = vand.u32 %v1478, 8388607
    %v1480 = vor.u32 %v1479, 8388608
    %v1481 = vsub.s32 0, %v1480
    %v1482 = vadd.s32 %v1477, 1
    %vm1483 = vcmp.gt.s32.totalorder %v1482, 0
    %v1484 = vsel %vm1483, %v1482, 0
    %v1485 = vshrl.u32 %v1484, 5
    %v1486 = vand.u32 %v1484, 31
    %v1487 = vsub.s32 32, %v1486
    %v1488 = vshrl.u32 683565275, %v1487
    %v1489 = vshll.u32 683565275, %v1486
    %v1490 = vshrl.u32 2475754826, %v1487
    %v1491 = vor.u32 %v1489, %v1490
    %v1492 = vshll.u32 2475754826, %v1486
    %v1493 = vshrl.u32 2131351028, %v1487
    %v1494 = vor.u32 %v1492, %v1493
    %v1495 = vshll.u32 2131351028, %v1486
    %v1496 = vshrl.u32 2102212464, %v1487
    %v1497 = vor.u32 %v1495, %v1496
    %v1498 = vshll.u32 2102212464, %v1486
    %v1499 = vshrl.u32 920167782, %v1487
    %v1500 = vor.u32 %v1498, %v1499
    %v1501 = vshll.u32 920167782, %v1486
    %v1502 = vshrl.u32 1326507024, %v1487
    %v1503 = vor.u32 %v1501, %v1502
    %vm1504 = vcmp.lt.s32.totalorder %v1485, 1
    %vm1505 = vcmp.lt.s32.totalorder %v1485, 2
    %vm1506 = vcmp.lt.s32.totalorder %v1485, 3
    %vm1507 = vcmp.lt.s32.totalorder %v1485, 4
    %v1508 = vsel %vm1504, %v1488, %v1491
    %v1509 = vsel %vm1507, %v1497, 2102212464
    %v1510 = vsel %vm1506, %v1494, %v1509
    %v1511 = vsel %vm1505, %v1508, %v1510
    %v1512 = vsel %vm1504, %v1491, %v1494
    %v1513 = vsel %vm1507, %v1500, 920167782
    %v1514 = vsel %vm1506, %v1497, %v1513
    %v1515 = vsel %vm1505, %v1512, %v1514
    %v1516 = vsel %vm1504, %v1494, %v1497
    %v1517 = vsel %vm1507, %v1503, 1326507024
    %v1518 = vsel %vm1506, %v1500, %v1517
    %v1519 = vsel %vm1505, %v1516, %v1518
    %v1520 = vshll.u32 %v1480, 8
    %v1521 = vmul.u32.u64.compose %v1520, %v1519
    %v1522 = vextract.low.u32 %v1521
    %v1523 = vextract.high.u32 %v1521
    %v1524 = vmul.u32.u64.compose %v1520, %v1515
    %v1525 = vextract.low.u32 %v1524
    %v1526 = vextract.high.u32 %v1524
    %v1527 = vmul.u32 %v1520, %v1511
    %v1528 = vadd.s32 %v1523, %v1525
    %vm1529 = vc.u32 %v1523, %v1525
    %v1530 = vadd.s32 %v1526, 1
    %v1531 = vsel %vm1529, %v1530, %v1526
    %v1532 = vadd.s32 %v1527, %v1531
    %v1533 = vadd.s32 %v1532, 536870912
    %v1534 = vshrl.u32 %v1533, 30
    %v1535 = vshll.u32 %v1534, 30
    %v1536 = vsub.s32 %v1532, %v1535
    %vm1537 = vcmp.lt.s32.totalorder %v1536, 0
    %v1538 = vsub.s32 0, %v1536
    %v1539 = vsel %vm1537, %v1538, %v1536
    %v1540 = vclz %v1539
    %v1541 = vsub.s32 %v1540, 2
    %vm1542 = vcmp.gt.s32.totalorder 0, %v1541
    %v1543 = vsel %vm1542, 0, %v1541
    %v1544 = vsub.s32 32, %v1543
    %v1545 = vshll.u32 %v1536, %v1543
    %v1546 = vshrl.u32 %v1528, %v1544
    %v1547 = vor.u32 %v1545, %v1546
    %v1548 = vsub.s32 4294967266, %v1543
    %v1549 = vadd.s32 %v1548, 127
    %v1550 = vshll.u32 %v1549, 23
    %v1551 = vor.u32 4788187, %v1550
    %v1552 = vand.u32 2147483647, %v1551
    %v1554 = vcvt.s32.f32 %v1547
    %v1555 = vmul.f32 %v1554, %v1552
    %v1556 = vxor.u32 %v1555, 2147483648
    %v1557 = vsel %vm1474, %v1556, %v1555
    %v1558 = vsub.s32 4, %v1534
    %v1559 = vsel %vm1474, %v1558, %v1534
    %v1560 = vsel %vm1473, %v1155, %v1557
    %v1561 = vsel %vm1473, 0, %v1559
    %v1562 = vcosq.f32.pop %v1560
    %v1563 = vsinq.f32.pop %v1560
    %vm1564 = vweird.f32 %v1155
    %v1565 = vadd.s32 %v1561, 3
    %v1566 = vand.u32 %v1565, 3
    %vm1567 = vcmp.lt.s32.totalorder %v1566, 2
    %vm1568 = vcmp.eq.s32.totalorder %v1566, 0
    %v1569 = vxor.u32 %v1563, 2147483648
    %v1570 = vsel %vm1568, %v1562, %v1569
    %vm1571 = vcmp.eq.s32.totalorder %v1566, 2
    %v1572 = vxor.u32 %v1562, 2147483648
    %v1573 = vsel %vm1571, %v1572, %v1563
    %v1574 = vsel %vm1567, %v1570, %v1573
    %v1575 = vsel %vm1564, nan, %v1574
    %v1576 = vand.u32 2147483647, %v1156
    %vm1577 = vcmp.le.f32.partialorder %v1576, 0.7853982
    %vm1578 = vcmp.lt.s32.totalorder %v1156, 0
    %v1579 = vand.u32 %v1156, 2139095040
    %v1580 = vshrl.u32 %v1579, 23
    %v1581 = vsub.s32 %v1580, 127
    %v1582 = vand.u32 2147483647, %v1156
    %v1583 = vand.u32 %v1582, 8388607
    %v1584 = vor.u32 %v1583, 8388608
    %v1585 = vsub.s32 0, %v1584
    %v1586 = vadd.s32 %v1581, 1
    %vm1587 = vcmp.gt.s32.totalorder %v1586, 0
    %v1588 = vsel %vm1587, %v1586, 0
    %v1589 = vshrl.u32 %v1588, 5
    %v1590 = vand.u32 %v1588, 31
    %v1591 = vsub.s32 32, %v1590
    %v1592 = vshrl.u32 683565275, %v1591
    %v1593 = vshll.u32 683565275, %v1590
    %v1594 = vshrl.u32 2475754826, %v1591
    %v1595 = vor.u32 %v1593, %v1594
    %v1596 = vshll.u32 2475754826, %v1590
    %v1597 = vshrl.u32 2131351028, %v1591
    %v1598 = vor.u32 %v1596, %v1597
    %v1599 = vshll.u32 2131351028, %v1590
    %v1600 = vshrl.u32 2102212464, %v1591
    %v1601 = vor.u32 %v1599, %v1600
    %v1602 = vshll.u32 2102212464, %v1590
    %v1603 = vshrl.u32 920167782, %v1591
    %v1604 = vor.u32 %v1602, %v1603
    %v1605 = vshll.u32 920167782, %v1590
    %v1606 = vshrl.u32 1326507024, %v1591
    %v1607 = vor.u32 %v1605, %v1606
    %vm1608 = vcmp.lt.s32.totalorder %v1589, 1
    %vm1609 = vcmp.lt.s32.totalorder %v1589, 2
    %vm1610 = vcmp.lt.s32.totalorder %v1589, 3
    %vm1611 = vcmp.lt.s32.totalorder %v1589, 4
    %v1612 = vsel %vm1608, %v1592, %v1595
    %v1613 = vsel %vm1611, %v1601, 2102212464
    %v1614 = vsel %vm1610, %v1598, %v1613
    %v1615 = vsel %vm1609, %v1612, %v1614
    %v1616 = vsel %vm1608, %v1595, %v1598
    %v1617 = vsel %vm1611, %v1604, 920167782
    %v1618 = vsel %vm1610, %v1601, %v1617
    %v1619 = vsel %vm1609, %v1616, %v1618
    %v1620 = vsel %vm1608, %v1598, %v1601
    %v1621 = vsel %vm1611, %v1607, 1326507024
    %v1622 = vsel %vm1610, %v1604, %v1621
    %v1623 = vsel %vm1609, %v1620, %v1622
    %v1624 = vshll.u32 %v1584, 8
    %v1625 = vmul.u32.u64.compose %v1624, %v1623
    %v1626 = vextract.low.u32 %v1625
    %v1627 = vextract.high.u32 %v1625
    %v1628 = vmul.u32.u64.compose %v1624, %v1619
    %v1629 = vextract.low.u32 %v1628
    %v1630 = vextract.high.u32 %v1628
    %v1631 = vmul.u32 %v1624, %v1615
    %v1632 = vadd.s32 %v1627, %v1629
    %vm1633 = vc.u32 %v1627, %v1629
    %v1634 = vadd.s32 %v1630, 1
    %v1635 = vsel %vm1633, %v1634, %v1630
    %v1636 = vadd.s32 %v1631, %v1635
    %v1637 = vadd.s32 %v1636, 536870912
    %v1638 = vshrl.u32 %v1637, 30
    %v1639 = vshll.u32 %v1638, 30
    %v1640 = vsub.s32 %v1636, %v1639
    %vm1641 = vcmp.lt.s32.totalorder %v1640, 0
    %v1642 = vsub.s32 0, %v1640
    %v1643 = vsel %vm1641, %v1642, %v1640
    %v1644 = vclz %v1643
    %v1645 = vsub.s32 %v1644, 2
    %vm1646 = vcmp.gt.s32.totalorder 0, %v1645
    %v1647 = vsel %vm1646, 0, %v1645
    %v1648 = vsub.s32 32, %v1647
    %v1649 = vshll.u32 %v1640, %v1647
    %v1650 = vshrl.u32 %v1632, %v1648
    %v1651 = vor.u32 %v1649, %v1650
    %v1652 = vsub.s32 4294967266, %v1647
    %v1653 = vadd.s32 %v1652, 127
    %v1654 = vshll.u32 %v1653, 23
    %v1655 = vor.u32 4788187, %v1654
    %v1656 = vand.u32 2147483647, %v1655
    %v1658 = vcvt.s32.f32 %v1651
    %v1659 = vmul.f32 %v1658, %v1656
    %v1660 = vxor.u32 %v1659, 2147483648
    %v1661 = vsel %vm1578, %v1660, %v1659
    %v1662 = vsub.s32 4, %v1638
    %v1663 = vsel %vm1578, %v1662, %v1638
    %v1664 = vsel %vm1577, %v1156, %v1661
    %v1665 = vsel %vm1577, 0, %v1663
    %v1666 = vcosq.f32.pop %v1664
    %v1667 = vsinq.f32.pop %v1664
    %vm1668 = vweird.f32 %v1156
    %v1669 = vadd.s32 %v1665, 3
    %v1670 = vand.u32 %v1669, 3
    %vm1671 = vcmp.lt.s32.totalorder %v1670, 2
    %vm1672 = vcmp.eq.s32.totalorder %v1670, 0
    %v1673 = vxor.u32 %v1667, 2147483648
    %v1674 = vsel %vm1672, %v1666, %v1673
    %vm1675 = vcmp.eq.s32.totalorder %v1670, 2
    %v1676 = vxor.u32 %v1666, 2147483648
    %v1677 = vsel %vm1675, %v1676, %v1667
    %v1678 = vsel %vm1671, %v1674, %v1677
    %v1679 = vsel %vm1668, nan, %v1678
    %v1680 = vand.u32 2147483647, %v1157
    %vm1681 = vcmp.le.f32.partialorder %v1680, 0.7853982
    %vm1682 = vcmp.lt.s32.totalorder %v1157, 0
    %v1683 = vand.u32 %v1157, 2139095040
    %v1684 = vshrl.u32 %v1683, 23
    %v1685 = vsub.s32 %v1684, 127
    %v1686 = vand.u32 2147483647, %v1157
    %v1687 = vand.u32 %v1686, 8388607
    %v1688 = vor.u32 %v1687, 8388608
    %v1689 = vsub.s32 0, %v1688
    %v1690 = vadd.s32 %v1685, 1
    %vm1691 = vcmp.gt.s32.totalorder %v1690, 0
    %v1692 = vsel %vm1691, %v1690, 0
    %v1693 = vshrl.u32 %v1692, 5
    %v1694 = vand.u32 %v1692, 31
    %v1695 = vsub.s32 32, %v1694
    %v1696 = vshrl.u32 683565275, %v1695
    %v1697 = vshll.u32 683565275, %v1694
    %v1698 = vshrl.u32 2475754826, %v1695
    %v1699 = vor.u32 %v1697, %v1698
    %v1700 = vshll.u32 2475754826, %v1694
    %v1701 = vshrl.u32 2131351028, %v1695
    %v1702 = vor.u32 %v1700, %v1701
    %v1703 = vshll.u32 2131351028, %v1694
    %v1704 = vshrl.u32 2102212464, %v1695
    %v1705 = vor.u32 %v1703, %v1704
    %v1706 = vshll.u32 2102212464, %v1694
    %v1707 = vshrl.u32 920167782, %v1695
    %v1708 = vor.u32 %v1706, %v1707
    %v1709 = vshll.u32 920167782, %v1694
    %v1710 = vshrl.u32 1326507024, %v1695
    %v1711 = vor.u32 %v1709, %v1710
    %vm1712 = vcmp.lt.s32.totalorder %v1693, 1
    %vm1713 = vcmp.lt.s32.totalorder %v1693, 2
    %vm1714 = vcmp.lt.s32.totalorder %v1693, 3
    %vm1715 = vcmp.lt.s32.totalorder %v1693, 4
    %v1716 = vsel %vm1712, %v1696, %v1699
    %v1717 = vsel %vm1715, %v1705, 2102212464
    %v1718 = vsel %vm1714, %v1702, %v1717
    %v1719 = vsel %vm1713, %v1716, %v1718
    %v1720 = vsel %vm1712, %v1699, %v1702
    %v1721 = vsel %vm1715, %v1708, 920167782
    %v1722 = vsel %vm1714, %v1705, %v1721
    %v1723 = vsel %vm1713, %v1720, %v1722
    %v1724 = vsel %vm1712, %v1702, %v1705
    %v1725 = vsel %vm1715, %v1711, 1326507024
    %v1726 = vsel %vm1714, %v1708, %v1725
    %v1727 = vsel %vm1713, %v1724, %v1726
    %v1728 = vshll.u32 %v1688, 8
    %v1729 = vmul.u32.u64.compose %v1728, %v1727
    %v1730 = vextract.low.u32 %v1729
    %v1731 = vextract.high.u32 %v1729
    %v1732 = vmul.u32.u64.compose %v1728, %v1723
    %v1733 = vextract.low.u32 %v1732
    %v1734 = vextract.high.u32 %v1732
    %v1735 = vmul.u32 %v1728, %v1719
    %v1736 = vadd.s32 %v1731, %v1733
    %vm1737 = vc.u32 %v1731, %v1733
    %v1738 = vadd.s32 %v1734, 1
    %v1739 = vsel %vm1737, %v1738, %v1734
    %v1740 = vadd.s32 %v1735, %v1739
    %v1741 = vadd.s32 %v1740, 536870912
    %v1742 = vshrl.u32 %v1741, 30
    %v1743 = vshll.u32 %v1742, 30
    %v1744 = vsub.s32 %v1740, %v1743
    %vm1745 = vcmp.lt.s32.totalorder %v1744, 0
    %v1746 = vsub.s32 0, %v1744
    %v1747 = vsel %vm1745, %v1746, %v1744
    %v1748 = vclz %v1747
    %v1749 = vsub.s32 %v1748, 2
    %vm1750 = vcmp.gt.s32.totalorder 0, %v1749
    %v1751 = vsel %vm1750, 0, %v1749
    %v1752 = vsub.s32 32, %v1751
    %v1753 = vshll.u32 %v1744, %v1751
    %v1754 = vshrl.u32 %v1736, %v1752
    %v1755 = vor.u32 %v1753, %v1754
    %v1756 = vsub.s32 4294967266, %v1751
    %v1757 = vadd.s32 %v1756, 127
    %v1758 = vshll.u32 %v1757, 23
    %v1759 = vor.u32 4788187, %v1758
    %v1760 = vand.u32 2147483647, %v1759
    %v1762 = vcvt.s32.f32 %v1755
    %v1763 = vmul.f32 %v1762, %v1760
    %v1764 = vxor.u32 %v1763, 2147483648
    %v1765 = vsel %vm1682, %v1764, %v1763
    %v1766 = vsub.s32 4, %v1742
    %v1767 = vsel %vm1682, %v1766, %v1742
    %v1768 = vsel %vm1681, %v1157, %v1765
    %v1769 = vsel %vm1681, 0, %v1767
    %v1770 = vcosq.f32.pop %v1768
    %v1771 = vsinq.f32.pop %v1768
    %vm1772 = vweird.f32 %v1157
    %v1773 = vadd.s32 %v1769, 3
    %v1774 = vand.u32 %v1773, 3
    %vm1775 = vcmp.lt.s32.totalorder %v1774, 2
    %vm1776 = vcmp.eq.s32.totalorder %v1774, 0
    %v1777 = vxor.u32 %v1771, 2147483648
    %v1778 = vsel %vm1776, %v1770, %v1777
    %vm1779 = vcmp.eq.s32.totalorder %v1774, 2
    %v1780 = vxor.u32 %v1770, 2147483648
    %v1781 = vsel %vm1779, %v1780, %v1771
    %v1782 = vsel %vm1775, %v1778, %v1781
    %v1783 = vsel %vm1772, nan, %v1782
    %v1784 = vand.u32 2147483647, %v1158
    %vm1785 = vcmp.le.f32.partialorder %v1784, 0.7853982
    %vm1786 = vcmp.lt.s32.totalorder %v1158, 0
    %v1787 = vand.u32 %v1158, 2139095040
    %v1788 = vshrl.u32 %v1787, 23
    %v1789 = vsub.s32 %v1788, 127
    %v1790 = vand.u32 2147483647, %v1158
    %v1791 = vand.u32 %v1790, 8388607
    %v1792 = vor.u32 %v1791, 8388608
    %v1793 = vsub.s32 0, %v1792
    %v1794 = vadd.s32 %v1789, 1
    %vm1795 = vcmp.gt.s32.totalorder %v1794, 0
    %v1796 = vsel %vm1795, %v1794, 0
    %v1797 = vshrl.u32 %v1796, 5
    %v1798 = vand.u32 %v1796, 31
    %v1799 = vsub.s32 32, %v1798
    %v1800 = vshrl.u32 683565275, %v1799
    %v1801 = vshll.u32 683565275, %v1798
    %v1802 = vshrl.u32 2475754826, %v1799
    %v1803 = vor.u32 %v1801, %v1802
    %v1804 = vshll.u32 2475754826, %v1798
    %v1805 = vshrl.u32 2131351028, %v1799
    %v1806 = vor.u32 %v1804, %v1805
    %v1807 = vshll.u32 2131351028, %v1798
    %v1808 = vshrl.u32 2102212464, %v1799
    %v1809 = vor.u32 %v1807, %v1808
    %v1810 = vshll.u32 2102212464, %v1798
    %v1811 = vshrl.u32 920167782, %v1799
    %v1812 = vor.u32 %v1810, %v1811
    %v1813 = vshll.u32 920167782, %v1798
    %v1814 = vshrl.u32 1326507024, %v1799
    %v1815 = vor.u32 %v1813, %v1814
    %vm1816 = vcmp.lt.s32.totalorder %v1797, 1
    %vm1817 = vcmp.lt.s32.totalorder %v1797, 2
    %vm1818 = vcmp.lt.s32.totalorder %v1797, 3
    %vm1819 = vcmp.lt.s32.totalorder %v1797, 4
    %v1820 = vsel %vm1816, %v1800, %v1803
    %v1821 = vsel %vm1819, %v1809, 2102212464
    %v1822 = vsel %vm1818, %v1806, %v1821
    %v1823 = vsel %vm1817, %v1820, %v1822
    %v1824 = vsel %vm1816, %v1803, %v1806
    %v1825 = vsel %vm1819, %v1812, 920167782
    %v1826 = vsel %vm1818, %v1809, %v1825
    %v1827 = vsel %vm1817, %v1824, %v1826
    %v1828 = vsel %vm1816, %v1806, %v1809
    %v1829 = vsel %vm1819, %v1815, 1326507024
    %v1830 = vsel %vm1818, %v1812, %v1829
    %v1831 = vsel %vm1817, %v1828, %v1830
    %v1832 = vshll.u32 %v1792, 8
    %v1833 = vmul.u32.u64.compose %v1832, %v1831
    %v1834 = vextract.low.u32 %v1833
    %v1835 = vextract.high.u32 %v1833
    %v1836 = vmul.u32.u64.compose %v1832, %v1827
    %v1837 = vextract.low.u32 %v1836
    %v1838 = vextract.high.u32 %v1836
    %v1839 = vmul.u32 %v1832, %v1823
    %v1840 = vadd.s32 %v1835, %v1837
    %vm1841 = vc.u32 %v1835, %v1837
    %v1842 = vadd.s32 %v1838, 1
    %v1843 = vsel %vm1841, %v1842, %v1838
    %v1844 = vadd.s32 %v1839, %v1843
    %v1845 = vadd.s32 %v1844, 536870912
    %v1846 = vshrl.u32 %v1845, 30
    %v1847 = vshll.u32 %v1846, 30
    %v1848 = vsub.s32 %v1844, %v1847
    %vm1849 = vcmp.lt.s32.totalorder %v1848, 0
    %v1850 = vsub.s32 0, %v1848
    %v1851 = vsel %vm1849, %v1850, %v1848
    %v1852 = vclz %v1851
    %v1853 = vsub.s32 %v1852, 2
    %vm1854 = vcmp.gt.s32.totalorder 0, %v1853
    %v1855 = vsel %vm1854, 0, %v1853
    %v1856 = vsub.s32 32, %v1855
    %v1857 = vshll.u32 %v1848, %v1855
    %v1858 = vshrl.u32 %v1840, %v1856
    %v1859 = vor.u32 %v1857, %v1858
    %v1860 = vsub.s32 4294967266, %v1855
    %v1861 = vadd.s32 %v1860, 127
    %v1862 = vshll.u32 %v1861, 23
    %v1863 = vor.u32 4788187, %v1862
    %v1864 = vand.u32 2147483647, %v1863
    %v1866 = vcvt.s32.f32 %v1859
    %v1867 = vmul.f32 %v1866, %v1864
    %v1868 = vxor.u32 %v1867, 2147483648
    %v1869 = vsel %vm1786, %v1868, %v1867
    %v1870 = vsub.s32 4, %v1846
    %v1871 = vsel %vm1786, %v1870, %v1846
    %v1872 = vsel %vm1785, %v1158, %v1869
    %v1873 = vsel %vm1785, 0, %v1871
    %v1874 = vcosq.f32.pop %v1872
    %v1875 = vsinq.f32.pop %v1872
    %vm1876 = vweird.f32 %v1158
    %v1877 = vadd.s32 %v1873, 3
    %v1878 = vand.u32 %v1877, 3
    %vm1879 = vcmp.lt.s32.totalorder %v1878, 2
    %vm1880 = vcmp.eq.s32.totalorder %v1878, 0
    %v1881 = vxor.u32 %v1875, 2147483648
    %v1882 = vsel %vm1880, %v1874, %v1881
    %vm1883 = vcmp.eq.s32.totalorder %v1878, 2
    %v1884 = vxor.u32 %v1874, 2147483648
    %v1885 = vsel %vm1883, %v1884, %v1875
    %v1886 = vsel %vm1879, %v1882, %v1885
    %v1887 = vsel %vm1876, nan, %v1886
    %v1888 = vand.u32 2147483647, %v1159
    %vm1889 = vcmp.le.f32.partialorder %v1888, 0.7853982
    %vm1890 = vcmp.lt.s32.totalorder %v1159, 0
    %v1891 = vand.u32 %v1159, 2139095040
    %v1892 = vshrl.u32 %v1891, 23
    %v1893 = vsub.s32 %v1892, 127
    %v1894 = vand.u32 2147483647, %v1159
    %v1895 = vand.u32 %v1894, 8388607
    %v1896 = vor.u32 %v1895, 8388608
    %v1897 = vsub.s32 0, %v1896
    %v1898 = vadd.s32 %v1893, 1
    %vm1899 = vcmp.gt.s32.totalorder %v1898, 0
    %v1900 = vsel %vm1899, %v1898, 0
    %v1901 = vshrl.u32 %v1900, 5
    %v1902 = vand.u32 %v1900, 31
    %v1903 = vsub.s32 32, %v1902
    %v1904 = vshrl.u32 683565275, %v1903
    %v1905 = vshll.u32 683565275, %v1902
    %v1906 = vshrl.u32 2475754826, %v1903
    %v1907 = vor.u32 %v1905, %v1906
    %v1908 = vshll.u32 2475754826, %v1902
    %v1909 = vshrl.u32 2131351028, %v1903
    %v1910 = vor.u32 %v1908, %v1909
    %v1911 = vshll.u32 2131351028, %v1902
    %v1912 = vshrl.u32 2102212464, %v1903
    %v1913 = vor.u32 %v1911, %v1912
    %v1914 = vshll.u32 2102212464, %v1902
    %v1915 = vshrl.u32 920167782, %v1903
    %v1916 = vor.u32 %v1914, %v1915
    %v1917 = vshll.u32 920167782, %v1902
    %v1918 = vshrl.u32 1326507024, %v1903
    %v1919 = vor.u32 %v1917, %v1918
    %vm1920 = vcmp.lt.s32.totalorder %v1901, 1
    %vm1921 = vcmp.lt.s32.totalorder %v1901, 2
    %vm1922 = vcmp.lt.s32.totalorder %v1901, 3
    %vm1923 = vcmp.lt.s32.totalorder %v1901, 4
    %v1924 = vsel %vm1920, %v1904, %v1907
    %v1925 = vsel %vm1923, %v1913, 2102212464
    %v1926 = vsel %vm1922, %v1910, %v1925
    %v1927 = vsel %vm1921, %v1924, %v1926
    %v1928 = vsel %vm1920, %v1907, %v1910
    %v1929 = vsel %vm1923, %v1916, 920167782
    %v1930 = vsel %vm1922, %v1913, %v1929
    %v1931 = vsel %vm1921, %v1928, %v1930
    %v1932 = vsel %vm1920, %v1910, %v1913
    %v1933 = vsel %vm1923, %v1919, 1326507024
    %v1934 = vsel %vm1922, %v1916, %v1933
    %v1935 = vsel %vm1921, %v1932, %v1934
    %v1936 = vshll.u32 %v1896, 8
    %v1937 = vmul.u32.u64.compose %v1936, %v1935
    %v1938 = vextract.low.u32 %v1937
    %v1939 = vextract.high.u32 %v1937
    %v1940 = vmul.u32.u64.compose %v1936, %v1931
    %v1941 = vextract.low.u32 %v1940
    %v1942 = vextract.high.u32 %v1940
    %v1943 = vmul.u32 %v1936, %v1927
    %v1944 = vadd.s32 %v1939, %v1941
    %vm1945 = vc.u32 %v1939, %v1941
    %v1946 = vadd.s32 %v1942, 1
    %v1947 = vsel %vm1945, %v1946, %v1942
    %v1948 = vadd.s32 %v1943, %v1947
    %v1949 = vadd.s32 %v1948, 536870912
    %v1950 = vshrl.u32 %v1949, 30
    %v1951 = vshll.u32 %v1950, 30
    %v1952 = vsub.s32 %v1948, %v1951
    %vm1953 = vcmp.lt.s32.totalorder %v1952, 0
    %v1954 = vsub.s32 0, %v1952
    %v1955 = vsel %vm1953, %v1954, %v1952
    %v1956 = vclz %v1955
    %v1957 = vsub.s32 %v1956, 2
    %vm1958 = vcmp.gt.s32.totalorder 0, %v1957
    %v1959 = vsel %vm1958, 0, %v1957
    %v1960 = vsub.s32 32, %v1959
    %v1961 = vshll.u32 %v1952, %v1959
    %v1962 = vshrl.u32 %v1944, %v1960
    %v1963 = vor.u32 %v1961, %v1962
    %v1964 = vsub.s32 4294967266, %v1959
    %v1965 = vadd.s32 %v1964, 127
    %v1966 = vshll.u32 %v1965, 23
    %v1967 = vor.u32 4788187, %v1966
    %v1968 = vand.u32 2147483647, %v1967
    %v1970 = vcvt.s32.f32 %v1963
    %v1971 = vmul.f32 %v1970, %v1968
    %v1972 = vxor.u32 %v1971, 2147483648
    %v1973 = vsel %vm1890, %v1972, %v1971
    %v1974 = vsub.s32 4, %v1950
    %v1975 = vsel %vm1890, %v1974, %v1950
    %v1976 = vsel %vm1889, %v1159, %v1973
    %v1977 = vsel %vm1889, 0, %v1975
    %v1978 = vcosq.f32.pop %v1976
    %v1979 = vsinq.f32.pop %v1976
    %vm1980 = vweird.f32 %v1159
    %v1981 = vadd.s32 %v1977, 3
    %v1982 = vand.u32 %v1981, 3
    %vm1983 = vcmp.lt.s32.totalorder %v1982, 2
    %vm1984 = vcmp.eq.s32.totalorder %v1982, 0
    %v1985 = vxor.u32 %v1979, 2147483648
    %v1986 = vsel %vm1984, %v1978, %v1985
    %vm1987 = vcmp.eq.s32.totalorder %v1982, 2
    %v1988 = vxor.u32 %v1978, 2147483648
    %v1989 = vsel %vm1987, %v1988, %v1979
    %v1990 = vsel %vm1983, %v1986, %v1989
    %v1991 = vsel %vm1980, nan, %v1990
    %s1992 = scalar_lea.vmem %s3, 16
    %v1993 = vld [vmem:[%s1992] sm:$0xf]
    %v1994 = vld [vmem:[%s1992 + $0x4] sm:$0xf]
    %v1995 = vld [vmem:[%s1992 + $0x8] sm:$0xf]
    %v1996 = vld [vmem:[%s1992 + $0xc] sm:$0xf]
    %s1997 = scalar_lea.vmem %s4, 32
    %v1998 = vld [vmem:[%s1997] sm:$0xff]
    %v1999 = vld [vmem:[%s1997 + $0x8] sm:$0xff]
    %v2000 = vld [vmem:[%s1997 + $0x10] sm:$0xff]
    %v2001 = vld [vmem:[%s1997 + $0x18] sm:$0xff]
    %v2002 = vpack.c.bf16 %v1471, %v1263
    %v2003 = vpack.c.bf16 %v1575, %v1367
    %v2004 = vpack.c.bf16 %v1887, %v1679
    %v2005 = vpack.c.bf16 %v1991, %v1783
    %2007 = vset.pattern.permute.xlu0 0
    %2008 = vperm.xlu0 %2007, %v1998
    %v2009 = vpop.permute.xlu0 %2008
    %2012 = vset.pattern.permute.xlu0 0
    %2013 = vperm.xlu0 %2012, %v1999
    %v2014 = vpop.permute.xlu0 %2013
    %2017 = vset.pattern.permute.xlu0 0
    %2018 = vperm.xlu0 %2017, %v2000
    %v2019 = vpop.permute.xlu0 %2018
    %2022 = vset.pattern.permute.xlu0 0
    %2023 = vperm.xlu0 %2022, %v2001
    %v2024 = vpop.permute.xlu0 %2023
    %v2030 = vunpack.c.l.b16 %v1993
    %v2031 = vunpack.c.l.b16 %v1994
    %v2032 = vunpack.c.l.b16 %v1995
    %v2033 = vunpack.c.l.b16 %v1996
    %v2034 = vpack.c.b16 %v2031, %v2030
    %v2035 = vpack.c.b16 %v2033, %v2032
    %v2037 = vsel %vm1068, %v2034, 0
    %v2040 = vsel %vm1068, %v2035, 0
    %2042 = vmatprep.subr.bf16.mxu0 %v2003
    %2043 = vmatpush1.bf16.msra.mxu0 %v2002
    %2044 = vmatprep.subr.bf16.mxu0 %v2005
    %2045 = vmatpush1.bf16.msra.mxu0 %v2004
    %2046 = vmatprep.subr.bf16.mxu0 0
    %2047 = vmatpush1.bf16.msra.mxu0 0
    %2048 = vmatprep.subr.bf16.mxu0 0
    %2049 = vmatpush1.bf16.msra.mxu0 0
    %2050 = vmatprep.subr.bf16.mxu0 0
    %2051 = vmatpush1.bf16.msra.mxu0 0
    %2052 = vmatprep.subr.bf16.mxu0 0
    %2053 = vmatpush1.bf16.msra.mxu0 0
    %2054 = vmatprep.subr.bf16.mxu0 0
    %2055 = vmatpush1.bf16.msra.mxu0 0
    %2056 = vmatprep.subr.bf16.mxu0 0
    %2057 = vmatpush1.bf16.msra.mxu0 0
    %2058 = vmatprep.subr.bf16.mxu0 0
    %2059 = vmatpush1.bf16.msra.mxu0 0
    %2060 = vmatprep.subr.bf16.mxu0 0
    %2061 = vmatpush1.bf16.msra.mxu0 0
    %2062 = vmatprep.subr.bf16.mxu0 0
    %2063 = vmatpush1.bf16.msra.mxu0 0
    %2064 = vmatprep.subr.bf16.mxu0 0
    %2065 = vmatpush1.bf16.msra.mxu0 0
    %2066 = vmatprep.subr.bf16.mxu0 0
    %2067 = vmatpush1.bf16.msra.mxu0 0
    %2068 = vmatprep.subr.bf16.mxu0 0
    %2069 = vmatpush1.bf16.msra.mxu0 0
    %2070 = vmatprep.subr.bf16.mxu0 0
    %2071 = vmatpush1.bf16.msra.mxu0 0
    %2072 = vmatprep.subr.bf16.mxu0 0
    %2073 = vmatpush1.bf16.msra.mxu0 0
    %2074 = vmatprep.mubr.bf16.mxu0 0
    %2075 = vmatmul.mubr.bf16.gmra.mrb[0].mxu0 %v2037
    %v2076 = vpop.f32.mrb[0].mxu0
    %v2077 = vadd.f32 %v2009, %v2076
    %v2078 = vpop.f32.mrb[0].mxu0
    %v2079 = vadd.f32 %v2009, %v2078
    %v2080 = vpop.f32.mrb[0].mxu0
    %v2081 = vadd.f32 %v2014, %v2080
    %v2082 = vpop.f32.mrb[0].mxu0
    %v2083 = vadd.f32 %v2014, %v2082
    %2084 = vmatprep.mubr.bf16.mxu0 0
    %2085 = vmatmul.mubr.bf16.gmra.mrb[0].mxu0 %v2040
    %v2086 = vpop.f32.mrb[0].mxu0
    %v2087 = vadd.f32 %v2019, %v2086
    %v2088 = vpop.f32.mrb[0].mxu0
    %v2089 = vadd.f32 %v2019, %v2088
    %v2090 = vpop.f32.mrb[0].mxu0
    %v2091 = vadd.f32 %v2024, %v2090
    %v2092 = vpop.f32.mrb[0].mxu0
    %v2093 = vadd.f32 %v2024, %v2092
    %2094 = vdwg.mxu0
    %v2095 = vand.u32 2147483647, %v2077
    %v2096 = vand.u32 2147483647, %v2079
    %v2097 = vand.u32 2147483647, %v2081
    %v2098 = vand.u32 2147483647, %v2083
    %v2099 = vand.u32 2147483647, %v2087
    %v2100 = vand.u32 2147483647, %v2089
    %v2101 = vand.u32 2147483647, %v2091
    %v2102 = vand.u32 2147483647, %v2093
    %v2103 = vadd.f32 %v2095, 1.0
    %v2104 = vadd.f32 %v2096, 1.0
    %v2105 = vadd.f32 %v2097, 1.0
    %v2106 = vadd.f32 %v2098, 1.0
    %v2107 = vadd.f32 %v2099, 1.0
    %v2108 = vadd.f32 %v2100, 1.0
    %v2109 = vadd.f32 %v2101, 1.0
    %v2110 = vadd.f32 %v2102, 1.0
    %v2111 = vmul.f32 %v2103, 30.0
    %v2112 = vmul.f32 %v2104, 30.0
    %v2113 = vmul.f32 %v2105, 30.0
    %v2114 = vmul.f32 %v2106, 30.0
    %v2115 = vmul.f32 %v2107, 30.0
    %v2116 = vmul.f32 %v2108, 30.0
    %v2117 = vmul.f32 %v2109, 30.0
    %v2118 = vmul.f32 %v2110, 30.0
    %v2119 = vmul.f32 %v2111, %v2077
    %v2120 = vmul.f32 %v2112, %v2079
    %v2121 = vmul.f32 %v2113, %v2081
    %v2122 = vmul.f32 %v2114, %v2083
    %v2123 = vmul.f32 %v2115, %v2087
    %v2124 = vmul.f32 %v2116, %v2089
    %v2125 = vmul.f32 %v2117, %v2091
    %v2126 = vmul.f32 %v2118, %v2093
    %v2127 = vand.u32 2147483647, %v2119
    %vm2128 = vcmp.le.f32.partialorder %v2127, 0.7853982
    %vm2129 = vcmp.lt.s32.totalorder %v2119, 0
    %v2130 = vand.u32 %v2119, 2139095040
    %v2131 = vshrl.u32 %v2130, 23
    %v2132 = vsub.s32 %v2131, 127
    %v2133 = vand.u32 2147483647, %v2119
    %v2134 = vand.u32 %v2133, 8388607
    %v2135 = vor.u32 %v2134, 8388608
    %v2136 = vsub.s32 0, %v2135
    %v2137 = vadd.s32 %v2132, 1
    %vm2138 = vcmp.gt.s32.totalorder %v2137, 0
    %v2139 = vsel %vm2138, %v2137, 0
    %v2140 = vshrl.u32 %v2139, 5
    %v2141 = vand.u32 %v2139, 31
    %v2142 = vsub.s32 32, %v2141
    %v2143 = vshrl.u32 683565275, %v2142
    %v2144 = vshll.u32 683565275, %v2141
    %v2145 = vshrl.u32 2475754826, %v2142
    %v2146 = vor.u32 %v2144, %v2145
    %v2147 = vshll.u32 2475754826, %v2141
    %v2148 = vshrl.u32 2131351028, %v2142
    %v2149 = vor.u32 %v2147, %v2148
    %v2150 = vshll.u32 2131351028, %v2141
    %v2151 = vshrl.u32 2102212464, %v2142
    %v2152 = vor.u32 %v2150, %v2151
    %v2153 = vshll.u32 2102212464, %v2141
    %v2154 = vshrl.u32 920167782, %v2142
    %v2155 = vor.u32 %v2153, %v2154
    %v2156 = vshll.u32 920167782, %v2141
    %v2157 = vshrl.u32 1326507024, %v2142
    %v2158 = vor.u32 %v2156, %v2157
    %vm2159 = vcmp.lt.s32.totalorder %v2140, 1
    %vm2160 = vcmp.lt.s32.totalorder %v2140, 2
    %vm2161 = vcmp.lt.s32.totalorder %v2140, 3
    %vm2162 = vcmp.lt.s32.totalorder %v2140, 4
    %v2163 = vsel %vm2159, %v2143, %v2146
    %v2164 = vsel %vm2162, %v2152, 2102212464
    %v2165 = vsel %vm2161, %v2149, %v2164
    %v2166 = vsel %vm2160, %v2163, %v2165
    %v2167 = vsel %vm2159, %v2146, %v2149
    %v2168 = vsel %vm2162, %v2155, 920167782
    %v2169 = vsel %vm2161, %v2152, %v2168
    %v2170 = vsel %vm2160, %v2167, %v2169
    %v2171 = vsel %vm2159, %v2149, %v2152
    %v2172 = vsel %vm2162, %v2158, 1326507024
    %v2173 = vsel %vm2161, %v2155, %v2172
    %v2174 = vsel %vm2160, %v2171, %v2173
    %v2175 = vshll.u32 %v2135, 8
    %v2176 = vmul.u32.u64.compose %v2175, %v2174
    %v2177 = vextract.low.u32 %v2176
    %v2178 = vextract.high.u32 %v2176
    %v2179 = vmul.u32.u64.compose %v2175, %v2170
    %v2180 = vextract.low.u32 %v2179
    %v2181 = vextract.high.u32 %v2179
    %v2182 = vmul.u32 %v2175, %v2166
    %v2183 = vadd.s32 %v2178, %v2180
    %vm2184 = vc.u32 %v2178, %v2180
    %v2185 = vadd.s32 %v2181, 1
    %v2186 = vsel %vm2184, %v2185, %v2181
    %v2187 = vadd.s32 %v2182, %v2186
    %v2188 = vadd.s32 %v2187, 536870912
    %v2189 = vshrl.u32 %v2188, 30
    %v2190 = vshll.u32 %v2189, 30
    %v2191 = vsub.s32 %v2187, %v2190
    %vm2192 = vcmp.lt.s32.totalorder %v2191, 0
    %v2193 = vsub.s32 0, %v2191
    %v2194 = vsel %vm2192, %v2193, %v2191
    %v2195 = vclz %v2194
    %v2196 = vsub.s32 %v2195, 2
    %vm2197 = vcmp.gt.s32.totalorder 0, %v2196
    %v2198 = vsel %vm2197, 0, %v2196
    %v2199 = vsub.s32 32, %v2198
    %v2200 = vshll.u32 %v2191, %v2198
    %v2201 = vshrl.u32 %v2183, %v2199
    %v2202 = vor.u32 %v2200, %v2201
    %v2203 = vsub.s32 4294967266, %v2198
    %v2204 = vadd.s32 %v2203, 127
    %v2205 = vshll.u32 %v2204, 23
    %v2206 = vor.u32 4788187, %v2205
    %v2207 = vand.u32 2147483647, %v2206
    %v2209 = vcvt.s32.f32 %v2202
    %v2210 = vmul.f32 %v2209, %v2207
    %v2211 = vxor.u32 %v2210, 2147483648
    %v2212 = vsel %vm2129, %v2211, %v2210
    %v2213 = vsub.s32 4, %v2189
    %v2214 = vsel %vm2129, %v2213, %v2189
    %v2215 = vsel %vm2128, %v2119, %v2212
    %v2216 = vsel %vm2128, 0, %v2214
    %v2217 = vcosq.f32.pop %v2215
    %v2218 = vsinq.f32.pop %v2215
    %vm2219 = vweird.f32 %v2119
    %v2220 = vadd.s32 %v2216, 3
    %v2221 = vand.u32 %v2220, 3
    %vm2222 = vcmp.lt.s32.totalorder %v2221, 2
    %vm2223 = vcmp.eq.s32.totalorder %v2221, 0
    %v2224 = vxor.u32 %v2218, 2147483648
    %v2225 = vsel %vm2223, %v2217, %v2224
    %vm2226 = vcmp.eq.s32.totalorder %v2221, 2
    %v2227 = vxor.u32 %v2217, 2147483648
    %v2228 = vsel %vm2226, %v2227, %v2218
    %v2229 = vsel %vm2222, %v2225, %v2228
    %v2230 = vsel %vm2219, nan, %v2229
    %v2231 = vand.u32 2147483647, %v2120
    %vm2232 = vcmp.le.f32.partialorder %v2231, 0.7853982
    %vm2233 = vcmp.lt.s32.totalorder %v2120, 0
    %v2234 = vand.u32 %v2120, 2139095040
    %v2235 = vshrl.u32 %v2234, 23
    %v2236 = vsub.s32 %v2235, 127
    %v2237 = vand.u32 2147483647, %v2120
    %v2238 = vand.u32 %v2237, 8388607
    %v2239 = vor.u32 %v2238, 8388608
    %v2240 = vsub.s32 0, %v2239
    %v2241 = vadd.s32 %v2236, 1
    %vm2242 = vcmp.gt.s32.totalorder %v2241, 0
    %v2243 = vsel %vm2242, %v2241, 0
    %v2244 = vshrl.u32 %v2243, 5
    %v2245 = vand.u32 %v2243, 31
    %v2246 = vsub.s32 32, %v2245
    %v2247 = vshrl.u32 683565275, %v2246
    %v2248 = vshll.u32 683565275, %v2245
    %v2249 = vshrl.u32 2475754826, %v2246
    %v2250 = vor.u32 %v2248, %v2249
    %v2251 = vshll.u32 2475754826, %v2245
    %v2252 = vshrl.u32 2131351028, %v2246
    %v2253 = vor.u32 %v2251, %v2252
    %v2254 = vshll.u32 2131351028, %v2245
    %v2255 = vshrl.u32 2102212464, %v2246
    %v2256 = vor.u32 %v2254, %v2255
    %v2257 = vshll.u32 2102212464, %v2245
    %v2258 = vshrl.u32 920167782, %v2246
    %v2259 = vor.u32 %v2257, %v2258
    %v2260 = vshll.u32 920167782, %v2245
    %v2261 = vshrl.u32 1326507024, %v2246
    %v2262 = vor.u32 %v2260, %v2261
    %vm2263 = vcmp.lt.s32.totalorder %v2244, 1
    %vm2264 = vcmp.lt.s32.totalorder %v2244, 2
    %vm2265 = vcmp.lt.s32.totalorder %v2244, 3
    %vm2266 = vcmp.lt.s32.totalorder %v2244, 4
    %v2267 = vsel %vm2263, %v2247, %v2250
    %v2268 = vsel %vm2266, %v2256, 2102212464
    %v2269 = vsel %vm2265, %v2253, %v2268
    %v2270 = vsel %vm2264, %v2267, %v2269
    %v2271 = vsel %vm2263, %v2250, %v2253
    %v2272 = vsel %vm2266, %v2259, 920167782
    %v2273 = vsel %vm2265, %v2256, %v2272
    %v2274 = vsel %vm2264, %v2271, %v2273
    %v2275 = vsel %vm2263, %v2253, %v2256
    %v2276 = vsel %vm2266, %v2262, 1326507024
    %v2277 = vsel %vm2265, %v2259, %v2276
    %v2278 = vsel %vm2264, %v2275, %v2277
    %v2279 = vshll.u32 %v2239, 8
    %v2280 = vmul.u32.u64.compose %v2279, %v2278
    %v2281 = vextract.low.u32 %v2280
    %v2282 = vextract.high.u32 %v2280
    %v2283 = vmul.u32.u64.compose %v2279, %v2274
    %v2284 = vextract.low.u32 %v2283
    %v2285 = vextract.high.u32 %v2283
    %v2286 = vmul.u32 %v2279, %v2270
    %v2287 = vadd.s32 %v2282, %v2284
    %vm2288 = vc.u32 %v2282, %v2284
    %v2289 = vadd.s32 %v2285, 1
    %v2290 = vsel %vm2288, %v2289, %v2285
    %v2291 = vadd.s32 %v2286, %v2290
    %v2292 = vadd.s32 %v2291, 536870912
    %v2293 = vshrl.u32 %v2292, 30
    %v2294 = vshll.u32 %v2293, 30
    %v2295 = vsub.s32 %v2291, %v2294
    %vm2296 = vcmp.lt.s32.totalorder %v2295, 0
    %v2297 = vsub.s32 0, %v2295
    %v2298 = vsel %vm2296, %v2297, %v2295
    %v2299 = vclz %v2298
    %v2300 = vsub.s32 %v2299, 2
    %vm2301 = vcmp.gt.s32.totalorder 0, %v2300
    %v2302 = vsel %vm2301, 0, %v2300
    %v2303 = vsub.s32 32, %v2302
    %v2304 = vshll.u32 %v2295, %v2302
    %v2305 = vshrl.u32 %v2287, %v2303
    %v2306 = vor.u32 %v2304, %v2305
    %v2307 = vsub.s32 4294967266, %v2302
    %v2308 = vadd.s32 %v2307, 127
    %v2309 = vshll.u32 %v2308, 23
    %v2310 = vor.u32 4788187, %v2309
    %v2311 = vand.u32 2147483647, %v2310
    %v2313 = vcvt.s32.f32 %v2306
    %v2314 = vmul.f32 %v2313, %v2311
    %v2315 = vxor.u32 %v2314, 2147483648
    %v2316 = vsel %vm2233, %v2315, %v2314
    %v2317 = vsub.s32 4, %v2293
    %v2318 = vsel %vm2233, %v2317, %v2293
    %v2319 = vsel %vm2232, %v2120, %v2316
    %v2320 = vsel %vm2232, 0, %v2318
    %v2321 = vcosq.f32.pop %v2319
    %v2322 = vsinq.f32.pop %v2319
    %vm2323 = vweird.f32 %v2120
    %v2324 = vadd.s32 %v2320, 3
    %v2325 = vand.u32 %v2324, 3
    %vm2326 = vcmp.lt.s32.totalorder %v2325, 2
    %vm2327 = vcmp.eq.s32.totalorder %v2325, 0
    %v2328 = vxor.u32 %v2322, 2147483648
    %v2329 = vsel %vm2327, %v2321, %v2328
    %vm2330 = vcmp.eq.s32.totalorder %v2325, 2
    %v2331 = vxor.u32 %v2321, 2147483648
    %v2332 = vsel %vm2330, %v2331, %v2322
    %v2333 = vsel %vm2326, %v2329, %v2332
    %v2334 = vsel %vm2323, nan, %v2333
    %v2335 = vand.u32 2147483647, %v2121
    %vm2336 = vcmp.le.f32.partialorder %v2335, 0.7853982
    %vm2337 = vcmp.lt.s32.totalorder %v2121, 0
    %v2338 = vand.u32 %v2121, 2139095040
    %v2339 = vshrl.u32 %v2338, 23
    %v2340 = vsub.s32 %v2339, 127
    %v2341 = vand.u32 2147483647, %v2121
    %v2342 = vand.u32 %v2341, 8388607
    %v2343 = vor.u32 %v2342, 8388608
    %v2344 = vsub.s32 0, %v2343
    %v2345 = vadd.s32 %v2340, 1
    %vm2346 = vcmp.gt.s32.totalorder %v2345, 0
    %v2347 = vsel %vm2346, %v2345, 0
    %v2348 = vshrl.u32 %v2347, 5
    %v2349 = vand.u32 %v2347, 31
    %v2350 = vsub.s32 32, %v2349
    %v2351 = vshrl.u32 683565275, %v2350
    %v2352 = vshll.u32 683565275, %v2349
    %v2353 = vshrl.u32 2475754826, %v2350
    %v2354 = vor.u32 %v2352, %v2353
    %v2355 = vshll.u32 2475754826, %v2349
    %v2356 = vshrl.u32 2131351028, %v2350
    %v2357 = vor.u32 %v2355, %v2356
    %v2358 = vshll.u32 2131351028, %v2349
    %v2359 = vshrl.u32 2102212464, %v2350
    %v2360 = vor.u32 %v2358, %v2359
    %v2361 = vshll.u32 2102212464, %v2349
    %v2362 = vshrl.u32 920167782, %v2350
    %v2363 = vor.u32 %v2361, %v2362
    %v2364 = vshll.u32 920167782, %v2349
    %v2365 = vshrl.u32 1326507024, %v2350
    %v2366 = vor.u32 %v2364, %v2365
    %vm2367 = vcmp.lt.s32.totalorder %v2348, 1
    %vm2368 = vcmp.lt.s32.totalorder %v2348, 2
    %vm2369 = vcmp.lt.s32.totalorder %v2348, 3
    %vm2370 = vcmp.lt.s32.totalorder %v2348, 4
    %v2371 = vsel %vm2367, %v2351, %v2354
    %v2372 = vsel %vm2370, %v2360, 2102212464
    %v2373 = vsel %vm2369, %v2357, %v2372
    %v2374 = vsel %vm2368, %v2371, %v2373
    %v2375 = vsel %vm2367, %v2354, %v2357
    %v2376 = vsel %vm2370, %v2363, 920167782
    %v2377 = vsel %vm2369, %v2360, %v2376
    %v2378 = vsel %vm2368, %v2375, %v2377
    %v2379 = vsel %vm2367, %v2357, %v2360
    %v2380 = vsel %vm2370, %v2366, 1326507024
    %v2381 = vsel %vm2369, %v2363, %v2380
    %v2382 = vsel %vm2368, %v2379, %v2381
    %v2383 = vshll.u32 %v2343, 8
    %v2384 = vmul.u32.u64.compose %v2383, %v2382
    %v2385 = vextract.low.u32 %v2384
    %v2386 = vextract.high.u32 %v2384
    %v2387 = vmul.u32.u64.compose %v2383, %v2378
    %v2388 = vextract.low.u32 %v2387
    %v2389 = vextract.high.u32 %v2387
    %v2390 = vmul.u32 %v2383, %v2374
    %v2391 = vadd.s32 %v2386, %v2388
    %vm2392 = vc.u32 %v2386, %v2388
    %v2393 = vadd.s32 %v2389, 1
    %v2394 = vsel %vm2392, %v2393, %v2389
    %v2395 = vadd.s32 %v2390, %v2394
    %v2396 = vadd.s32 %v2395, 536870912
    %v2397 = vshrl.u32 %v2396, 30
    %v2398 = vshll.u32 %v2397, 30
    %v2399 = vsub.s32 %v2395, %v2398
    %vm2400 = vcmp.lt.s32.totalorder %v2399, 0
    %v2401 = vsub.s32 0, %v2399
    %v2402 = vsel %vm2400, %v2401, %v2399
    %v2403 = vclz %v2402
    %v2404 = vsub.s32 %v2403, 2
    %vm2405 = vcmp.gt.s32.totalorder 0, %v2404
    %v2406 = vsel %vm2405, 0, %v2404
    %v2407 = vsub.s32 32, %v2406
    %v2408 = vshll.u32 %v2399, %v2406
    %v2409 = vshrl.u32 %v2391, %v2407
    %v2410 = vor.u32 %v2408, %v2409
    %v2411 = vsub.s32 4294967266, %v2406
    %v2412 = vadd.s32 %v2411, 127
    %v2413 = vshll.u32 %v2412, 23
    %v2414 = vor.u32 4788187, %v2413
    %v2415 = vand.u32 2147483647, %v2414
    %v2417 = vcvt.s32.f32 %v2410
    %v2418 = vmul.f32 %v2417, %v2415
    %v2419 = vxor.u32 %v2418, 2147483648
    %v2420 = vsel %vm2337, %v2419, %v2418
    %v2421 = vsub.s32 4, %v2397
    %v2422 = vsel %vm2337, %v2421, %v2397
    %v2423 = vsel %vm2336, %v2121, %v2420
    %v2424 = vsel %vm2336, 0, %v2422
    %v2425 = vcosq.f32.pop %v2423
    %v2426 = vsinq.f32.pop %v2423
    %vm2427 = vweird.f32 %v2121
    %v2428 = vadd.s32 %v2424, 3
    %v2429 = vand.u32 %v2428, 3
    %vm2430 = vcmp.lt.s32.totalorder %v2429, 2
    %vm2431 = vcmp.eq.s32.totalorder %v2429, 0
    %v2432 = vxor.u32 %v2426, 2147483648
    %v2433 = vsel %vm2431, %v2425, %v2432
    %vm2434 = vcmp.eq.s32.totalorder %v2429, 2
    %v2435 = vxor.u32 %v2425, 2147483648
    %v2436 = vsel %vm2434, %v2435, %v2426
    %v2437 = vsel %vm2430, %v2433, %v2436
    %v2438 = vsel %vm2427, nan, %v2437
    %v2439 = vand.u32 2147483647, %v2122
    %vm2440 = vcmp.le.f32.partialorder %v2439, 0.7853982
    %vm2441 = vcmp.lt.s32.totalorder %v2122, 0
    %v2442 = vand.u32 %v2122, 2139095040
    %v2443 = vshrl.u32 %v2442, 23
    %v2444 = vsub.s32 %v2443, 127
    %v2445 = vand.u32 2147483647, %v2122
    %v2446 = vand.u32 %v2445, 8388607
    %v2447 = vor.u32 %v2446, 8388608
    %v2448 = vsub.s32 0, %v2447
    %v2449 = vadd.s32 %v2444, 1
    %vm2450 = vcmp.gt.s32.totalorder %v2449, 0
    %v2451 = vsel %vm2450, %v2449, 0
    %v2452 = vshrl.u32 %v2451, 5
    %v2453 = vand.u32 %v2451, 31
    %v2454 = vsub.s32 32, %v2453
    %v2455 = vshrl.u32 683565275, %v2454
    %v2456 = vshll.u32 683565275, %v2453
    %v2457 = vshrl.u32 2475754826, %v2454
    %v2458 = vor.u32 %v2456, %v2457
    %v2459 = vshll.u32 2475754826, %v2453
    %v2460 = vshrl.u32 2131351028, %v2454
    %v2461 = vor.u32 %v2459, %v2460
    %v2462 = vshll.u32 2131351028, %v2453
    %v2463 = vshrl.u32 2102212464, %v2454
    %v2464 = vor.u32 %v2462, %v2463
    %v2465 = vshll.u32 2102212464, %v2453
    %v2466 = vshrl.u32 920167782, %v2454
    %v2467 = vor.u32 %v2465, %v2466
    %v2468 = vshll.u32 920167782, %v2453
    %v2469 = vshrl.u32 1326507024, %v2454
    %v2470 = vor.u32 %v2468, %v2469
    %vm2471 = vcmp.lt.s32.totalorder %v2452, 1
    %vm2472 = vcmp.lt.s32.totalorder %v2452, 2
    %vm2473 = vcmp.lt.s32.totalorder %v2452, 3
    %vm2474 = vcmp.lt.s32.totalorder %v2452, 4
    %v2475 = vsel %vm2471, %v2455, %v2458
    %v2476 = vsel %vm2474, %v2464, 2102212464
    %v2477 = vsel %vm2473, %v2461, %v2476
    %v2478 = vsel %vm2472, %v2475, %v2477
    %v2479 = vsel %vm2471, %v2458, %v2461
    %v2480 = vsel %vm2474, %v2467, 920167782
    %v2481 = vsel %vm2473, %v2464, %v2480
    %v2482 = vsel %vm2472, %v2479, %v2481
    %v2483 = vsel %vm2471, %v2461, %v2464
    %v2484 = vsel %vm2474, %v2470, 1326507024
    %v2485 = vsel %vm2473, %v2467, %v2484
    %v2486 = vsel %vm2472, %v2483, %v2485
    %v2487 = vshll.u32 %v2447, 8
    %v2488 = vmul.u32.u64.compose %v2487, %v2486
    %v2489 = vextract.low.u32 %v2488
    %v2490 = vextract.high.u32 %v2488
    %v2491 = vmul.u32.u64.compose %v2487, %v2482
    %v2492 = vextract.low.u32 %v2491
    %v2493 = vextract.high.u32 %v2491
    %v2494 = vmul.u32 %v2487, %v2478
    %v2495 = vadd.s32 %v2490, %v2492
    %vm2496 = vc.u32 %v2490, %v2492
    %v2497 = vadd.s32 %v2493, 1
    %v2498 = vsel %vm2496, %v2497, %v2493
    %v2499 = vadd.s32 %v2494, %v2498
    %v2500 = vadd.s32 %v2499, 536870912
    %v2501 = vshrl.u32 %v2500, 30
    %v2502 = vshll.u32 %v2501, 30
    %v2503 = vsub.s32 %v2499, %v2502
    %vm2504 = vcmp.lt.s32.totalorder %v2503, 0
    %v2505 = vsub.s32 0, %v2503
    %v2506 = vsel %vm2504, %v2505, %v2503
    %v2507 = vclz %v2506
    %v2508 = vsub.s32 %v2507, 2
    %vm2509 = vcmp.gt.s32.totalorder 0, %v2508
    %v2510 = vsel %vm2509, 0, %v2508
    %v2511 = vsub.s32 32, %v2510
    %v2512 = vshll.u32 %v2503, %v2510
    %v2513 = vshrl.u32 %v2495, %v2511
    %v2514 = vor.u32 %v2512, %v2513
    %v2515 = vsub.s32 4294967266, %v2510
    %v2516 = vadd.s32 %v2515, 127
    %v2517 = vshll.u32 %v2516, 23
    %v2518 = vor.u32 4788187, %v2517
    %v2519 = vand.u32 2147483647, %v2518
    %v2521 = vcvt.s32.f32 %v2514
    %v2522 = vmul.f32 %v2521, %v2519
    %v2523 = vxor.u32 %v2522, 2147483648
    %v2524 = vsel %vm2441, %v2523, %v2522
    %v2525 = vsub.s32 4, %v2501
    %v2526 = vsel %vm2441, %v2525, %v2501
    %v2527 = vsel %vm2440, %v2122, %v2524
    %v2528 = vsel %vm2440, 0, %v2526
    %v2529 = vcosq.f32.pop %v2527
    %v2530 = vsinq.f32.pop %v2527
    %vm2531 = vweird.f32 %v2122
    %v2532 = vadd.s32 %v2528, 3
    %v2533 = vand.u32 %v2532, 3
    %vm2534 = vcmp.lt.s32.totalorder %v2533, 2
    %vm2535 = vcmp.eq.s32.totalorder %v2533, 0
    %v2536 = vxor.u32 %v2530, 2147483648
    %v2537 = vsel %vm2535, %v2529, %v2536
    %vm2538 = vcmp.eq.s32.totalorder %v2533, 2
    %v2539 = vxor.u32 %v2529, 2147483648
    %v2540 = vsel %vm2538, %v2539, %v2530
    %v2541 = vsel %vm2534, %v2537, %v2540
    %v2542 = vsel %vm2531, nan, %v2541
    %v2543 = vand.u32 2147483647, %v2123
    %vm2544 = vcmp.le.f32.partialorder %v2543, 0.7853982
    %vm2545 = vcmp.lt.s32.totalorder %v2123, 0
    %v2546 = vand.u32 %v2123, 2139095040
    %v2547 = vshrl.u32 %v2546, 23
    %v2548 = vsub.s32 %v2547, 127
    %v2549 = vand.u32 2147483647, %v2123
    %v2550 = vand.u32 %v2549, 8388607
    %v2551 = vor.u32 %v2550, 8388608
    %v2552 = vsub.s32 0, %v2551
    %v2553 = vadd.s32 %v2548, 1
    %vm2554 = vcmp.gt.s32.totalorder %v2553, 0
    %v2555 = vsel %vm2554, %v2553, 0
    %v2556 = vshrl.u32 %v2555, 5
    %v2557 = vand.u32 %v2555, 31
    %v2558 = vsub.s32 32, %v2557
    %v2559 = vshrl.u32 683565275, %v2558
    %v2560 = vshll.u32 683565275, %v2557
    %v2561 = vshrl.u32 2475754826, %v2558
    %v2562 = vor.u32 %v2560, %v2561
    %v2563 = vshll.u32 2475754826, %v2557
    %v2564 = vshrl.u32 2131351028, %v2558
    %v2565 = vor.u32 %v2563, %v2564
    %v2566 = vshll.u32 2131351028, %v2557
    %v2567 = vshrl.u32 2102212464, %v2558
    %v2568 = vor.u32 %v2566, %v2567
    %v2569 = vshll.u32 2102212464, %v2557
    %v2570 = vshrl.u32 920167782, %v2558
    %v2571 = vor.u32 %v2569, %v2570
    %v2572 = vshll.u32 920167782, %v2557
    %v2573 = vshrl.u32 1326507024, %v2558
    %v2574 = vor.u32 %v2572, %v2573
    %vm2575 = vcmp.lt.s32.totalorder %v2556, 1
    %vm2576 = vcmp.lt.s32.totalorder %v2556, 2
    %vm2577 = vcmp.lt.s32.totalorder %v2556, 3
    %vm2578 = vcmp.lt.s32.totalorder %v2556, 4
    %v2579 = vsel %vm2575, %v2559, %v2562
    %v2580 = vsel %vm2578, %v2568, 2102212464
    %v2581 = vsel %vm2577, %v2565, %v2580
    %v2582 = vsel %vm2576, %v2579, %v2581
    %v2583 = vsel %vm2575, %v2562, %v2565
    %v2584 = vsel %vm2578, %v2571, 920167782
    %v2585 = vsel %vm2577, %v2568, %v2584
    %v2586 = vsel %vm2576, %v2583, %v2585
    %v2587 = vsel %vm2575, %v2565, %v2568
    %v2588 = vsel %vm2578, %v2574, 1326507024
    %v2589 = vsel %vm2577, %v2571, %v2588
    %v2590 = vsel %vm2576, %v2587, %v2589
    %v2591 = vshll.u32 %v2551, 8
    %v2592 = vmul.u32.u64.compose %v2591, %v2590
    %v2593 = vextract.low.u32 %v2592
    %v2594 = vextract.high.u32 %v2592
    %v2595 = vmul.u32.u64.compose %v2591, %v2586
    %v2596 = vextract.low.u32 %v2595
    %v2597 = vextract.high.u32 %v2595
    %v2598 = vmul.u32 %v2591, %v2582
    %v2599 = vadd.s32 %v2594, %v2596
    %vm2600 = vc.u32 %v2594, %v2596
    %v2601 = vadd.s32 %v2597, 1
    %v2602 = vsel %vm2600, %v2601, %v2597
    %v2603 = vadd.s32 %v2598, %v2602
    %v2604 = vadd.s32 %v2603, 536870912
    %v2605 = vshrl.u32 %v2604, 30
    %v2606 = vshll.u32 %v2605, 30
    %v2607 = vsub.s32 %v2603, %v2606
    %vm2608 = vcmp.lt.s32.totalorder %v2607, 0
    %v2609 = vsub.s32 0, %v2607
    %v2610 = vsel %vm2608, %v2609, %v2607
    %v2611 = vclz %v2610
    %v2612 = vsub.s32 %v2611, 2
    %vm2613 = vcmp.gt.s32.totalorder 0, %v2612
    %v2614 = vsel %vm2613, 0, %v2612
    %v2615 = vsub.s32 32, %v2614
    %v2616 = vshll.u32 %v2607, %v2614
    %v2617 = vshrl.u32 %v2599, %v2615
    %v2618 = vor.u32 %v2616, %v2617
    %v2619 = vsub.s32 4294967266, %v2614
    %v2620 = vadd.s32 %v2619, 127
    %v2621 = vshll.u32 %v2620, 23
    %v2622 = vor.u32 4788187, %v2621
    %v2623 = vand.u32 2147483647, %v2622
    %v2625 = vcvt.s32.f32 %v2618
    %v2626 = vmul.f32 %v2625, %v2623
    %v2627 = vxor.u32 %v2626, 2147483648
    %v2628 = vsel %vm2545, %v2627, %v2626
    %v2629 = vsub.s32 4, %v2605
    %v2630 = vsel %vm2545, %v2629, %v2605
    %v2631 = vsel %vm2544, %v2123, %v2628
    %v2632 = vsel %vm2544, 0, %v2630
    %v2633 = vcosq.f32.pop %v2631
    %v2634 = vsinq.f32.pop %v2631
    %vm2635 = vweird.f32 %v2123
    %v2636 = vadd.s32 %v2632, 3
    %v2637 = vand.u32 %v2636, 3
    %vm2638 = vcmp.lt.s32.totalorder %v2637, 2
    %vm2639 = vcmp.eq.s32.totalorder %v2637, 0
    %v2640 = vxor.u32 %v2634, 2147483648
    %v2641 = vsel %vm2639, %v2633, %v2640
    %vm2642 = vcmp.eq.s32.totalorder %v2637, 2
    %v2643 = vxor.u32 %v2633, 2147483648
    %v2644 = vsel %vm2642, %v2643, %v2634
    %v2645 = vsel %vm2638, %v2641, %v2644
    %v2646 = vsel %vm2635, nan, %v2645
    %v2647 = vand.u32 2147483647, %v2124
    %vm2648 = vcmp.le.f32.partialorder %v2647, 0.7853982
    %vm2649 = vcmp.lt.s32.totalorder %v2124, 0
    %v2650 = vand.u32 %v2124, 2139095040
    %v2651 = vshrl.u32 %v2650, 23
    %v2652 = vsub.s32 %v2651, 127
    %v2653 = vand.u32 2147483647, %v2124
    %v2654 = vand.u32 %v2653, 8388607
    %v2655 = vor.u32 %v2654, 8388608
    %v2656 = vsub.s32 0, %v2655
    %v2657 = vadd.s32 %v2652, 1
    %vm2658 = vcmp.gt.s32.totalorder %v2657, 0
    %v2659 = vsel %vm2658, %v2657, 0
    %v2660 = vshrl.u32 %v2659, 5
    %v2661 = vand.u32 %v2659, 31
    %v2662 = vsub.s32 32, %v2661
    %v2663 = vshrl.u32 683565275, %v2662
    %v2664 = vshll.u32 683565275, %v2661
    %v2665 = vshrl.u32 2475754826, %v2662
    %v2666 = vor.u32 %v2664, %v2665
    %v2667 = vshll.u32 2475754826, %v2661
    %v2668 = vshrl.u32 2131351028, %v2662
    %v2669 = vor.u32 %v2667, %v2668
    %v2670 = vshll.u32 2131351028, %v2661
    %v2671 = vshrl.u32 2102212464, %v2662
    %v2672 = vor.u32 %v2670, %v2671
    %v2673 = vshll.u32 2102212464, %v2661
    %v2674 = vshrl.u32 920167782, %v2662
    %v2675 = vor.u32 %v2673, %v2674
    %v2676 = vshll.u32 920167782, %v2661
    %v2677 = vshrl.u32 1326507024, %v2662
    %v2678 = vor.u32 %v2676, %v2677
    %vm2679 = vcmp.lt.s32.totalorder %v2660, 1
    %vm2680 = vcmp.lt.s32.totalorder %v2660, 2
    %vm2681 = vcmp.lt.s32.totalorder %v2660, 3
    %vm2682 = vcmp.lt.s32.totalorder %v2660, 4
    %v2683 = vsel %vm2679, %v2663, %v2666
    %v2684 = vsel %vm2682, %v2672, 2102212464
    %v2685 = vsel %vm2681, %v2669, %v2684
    %v2686 = vsel %vm2680, %v2683, %v2685
    %v2687 = vsel %vm2679, %v2666, %v2669
    %v2688 = vsel %vm2682, %v2675, 920167782
    %v2689 = vsel %vm2681, %v2672, %v2688
    %v2690 = vsel %vm2680, %v2687, %v2689
    %v2691 = vsel %vm2679, %v2669, %v2672
    %v2692 = vsel %vm2682, %v2678, 1326507024
    %v2693 = vsel %vm2681, %v2675, %v2692
    %v2694 = vsel %vm2680, %v2691, %v2693
    %v2695 = vshll.u32 %v2655, 8
    %v2696 = vmul.u32.u64.compose %v2695, %v2694
    %v2697 = vextract.low.u32 %v2696
    %v2698 = vextract.high.u32 %v2696
    %v2699 = vmul.u32.u64.compose %v2695, %v2690
    %v2700 = vextract.low.u32 %v2699
    %v2701 = vextract.high.u32 %v2699
    %v2702 = vmul.u32 %v2695, %v2686
    %v2703 = vadd.s32 %v2698, %v2700
    %vm2704 = vc.u32 %v2698, %v2700
    %v2705 = vadd.s32 %v2701, 1
    %v2706 = vsel %vm2704, %v2705, %v2701
    %v2707 = vadd.s32 %v2702, %v2706
    %v2708 = vadd.s32 %v2707, 536870912
    %v2709 = vshrl.u32 %v2708, 30
    %v2710 = vshll.u32 %v2709, 30
    %v2711 = vsub.s32 %v2707, %v2710
    %vm2712 = vcmp.lt.s32.totalorder %v2711, 0
    %v2713 = vsub.s32 0, %v2711
    %v2714 = vsel %vm2712, %v2713, %v2711
    %v2715 = vclz %v2714
    %v2716 = vsub.s32 %v2715, 2
    %vm2717 = vcmp.gt.s32.totalorder 0, %v2716
    %v2718 = vsel %vm2717, 0, %v2716
    %v2719 = vsub.s32 32, %v2718
    %v2720 = vshll.u32 %v2711, %v2718
    %v2721 = vshrl.u32 %v2703, %v2719
    %v2722 = vor.u32 %v2720, %v2721
    %v2723 = vsub.s32 4294967266, %v2718
    %v2724 = vadd.s32 %v2723, 127
    %v2725 = vshll.u32 %v2724, 23
    %v2726 = vor.u32 4788187, %v2725
    %v2727 = vand.u32 2147483647, %v2726
    %v2729 = vcvt.s32.f32 %v2722
    %v2730 = vmul.f32 %v2729, %v2727
    %v2731 = vxor.u32 %v2730, 2147483648
    %v2732 = vsel %vm2649, %v2731, %v2730
    %v2733 = vsub.s32 4, %v2709
    %v2734 = vsel %vm2649, %v2733, %v2709
    %v2735 = vsel %vm2648, %v2124, %v2732
    %v2736 = vsel %vm2648, 0, %v2734
    %v2737 = vcosq.f32.pop %v2735
    %v2738 = vsinq.f32.pop %v2735
    %vm2739 = vweird.f32 %v2124
    %v2740 = vadd.s32 %v2736, 3
    %v2741 = vand.u32 %v2740, 3
    %vm2742 = vcmp.lt.s32.totalorder %v2741, 2
    %vm2743 = vcmp.eq.s32.totalorder %v2741, 0
    %v2744 = vxor.u32 %v2738, 2147483648
    %v2745 = vsel %vm2743, %v2737, %v2744
    %vm2746 = vcmp.eq.s32.totalorder %v2741, 2
    %v2747 = vxor.u32 %v2737, 2147483648
    %v2748 = vsel %vm2746, %v2747, %v2738
    %v2749 = vsel %vm2742, %v2745, %v2748
    %v2750 = vsel %vm2739, nan, %v2749
    %v2751 = vand.u32 2147483647, %v2125
    %vm2752 = vcmp.le.f32.partialorder %v2751, 0.7853982
    %vm2753 = vcmp.lt.s32.totalorder %v2125, 0
    %v2754 = vand.u32 %v2125, 2139095040
    %v2755 = vshrl.u32 %v2754, 23
    %v2756 = vsub.s32 %v2755, 127
    %v2757 = vand.u32 2147483647, %v2125
    %v2758 = vand.u32 %v2757, 8388607
    %v2759 = vor.u32 %v2758, 8388608
    %v2760 = vsub.s32 0, %v2759
    %v2761 = vadd.s32 %v2756, 1
    %vm2762 = vcmp.gt.s32.totalorder %v2761, 0
    %v2763 = vsel %vm2762, %v2761, 0
    %v2764 = vshrl.u32 %v2763, 5
    %v2765 = vand.u32 %v2763, 31
    %v2766 = vsub.s32 32, %v2765
    %v2767 = vshrl.u32 683565275, %v2766
    %v2768 = vshll.u32 683565275, %v2765
    %v2769 = vshrl.u32 2475754826, %v2766
    %v2770 = vor.u32 %v2768, %v2769
    %v2771 = vshll.u32 2475754826, %v2765
    %v2772 = vshrl.u32 2131351028, %v2766
    %v2773 = vor.u32 %v2771, %v2772
    %v2774 = vshll.u32 2131351028, %v2765
    %v2775 = vshrl.u32 2102212464, %v2766
    %v2776 = vor.u32 %v2774, %v2775
    %v2777 = vshll.u32 2102212464, %v2765
    %v2778 = vshrl.u32 920167782, %v2766
    %v2779 = vor.u32 %v2777, %v2778
    %v2780 = vshll.u32 920167782, %v2765
    %v2781 = vshrl.u32 1326507024, %v2766
    %v2782 = vor.u32 %v2780, %v2781
    %vm2783 = vcmp.lt.s32.totalorder %v2764, 1
    %vm2784 = vcmp.lt.s32.totalorder %v2764, 2
    %vm2785 = vcmp.lt.s32.totalorder %v2764, 3
    %vm2786 = vcmp.lt.s32.totalorder %v2764, 4
    %v2787 = vsel %vm2783, %v2767, %v2770
    %v2788 = vsel %vm2786, %v2776, 2102212464
    %v2789 = vsel %vm2785, %v2773, %v2788
    %v2790 = vsel %vm2784, %v2787, %v2789
    %v2791 = vsel %vm2783, %v2770, %v2773
    %v2792 = vsel %vm2786, %v2779, 920167782
    %v2793 = vsel %vm2785, %v2776, %v2792
    %v2794 = vsel %vm2784, %v2791, %v2793
    %v2795 = vsel %vm2783, %v2773, %v2776
    %v2796 = vsel %vm2786, %v2782, 1326507024
    %v2797 = vsel %vm2785, %v2779, %v2796
    %v2798 = vsel %vm2784, %v2795, %v2797
    %v2799 = vshll.u32 %v2759, 8
    %v2800 = vmul.u32.u64.compose %v2799, %v2798
    %v2801 = vextract.low.u32 %v2800
    %v2802 = vextract.high.u32 %v2800
    %v2803 = vmul.u32.u64.compose %v2799, %v2794
    %v2804 = vextract.low.u32 %v2803
    %v2805 = vextract.high.u32 %v2803
    %v2806 = vmul.u32 %v2799, %v2790
    %v2807 = vadd.s32 %v2802, %v2804
    %vm2808 = vc.u32 %v2802, %v2804
    %v2809 = vadd.s32 %v2805, 1
    %v2810 = vsel %vm2808, %v2809, %v2805
    %v2811 = vadd.s32 %v2806, %v2810
    %v2812 = vadd.s32 %v2811, 536870912
    %v2813 = vshrl.u32 %v2812, 30
    %v2814 = vshll.u32 %v2813, 30
    %v2815 = vsub.s32 %v2811, %v2814
    %vm2816 = vcmp.lt.s32.totalorder %v2815, 0
    %v2817 = vsub.s32 0, %v2815
    %v2818 = vsel %vm2816, %v2817, %v2815
    %v2819 = vclz %v2818
    %v2820 = vsub.s32 %v2819, 2
    %vm2821 = vcmp.gt.s32.totalorder 0, %v2820
    %v2822 = vsel %vm2821, 0, %v2820
    %v2823 = vsub.s32 32, %v2822
    %v2824 = vshll.u32 %v2815, %v2822
    %v2825 = vshrl.u32 %v2807, %v2823
    %v2826 = vor.u32 %v2824, %v2825
    %v2827 = vsub.s32 4294967266, %v2822
    %v2828 = vadd.s32 %v2827, 127
    %v2829 = vshll.u32 %v2828, 23
    %v2830 = vor.u32 4788187, %v2829
    %v2831 = vand.u32 2147483647, %v2830
    %v2833 = vcvt.s32.f32 %v2826
    %v2834 = vmul.f32 %v2833, %v2831
    %v2835 = vxor.u32 %v2834, 2147483648
    %v2836 = vsel %vm2753, %v2835, %v2834
    %v2837 = vsub.s32 4, %v2813
    %v2838 = vsel %vm2753, %v2837, %v2813
    %v2839 = vsel %vm2752, %v2125, %v2836
    %v2840 = vsel %vm2752, 0, %v2838
    %v2841 = vcosq.f32.pop %v2839
    %v2842 = vsinq.f32.pop %v2839
    %vm2843 = vweird.f32 %v2125
    %v2844 = vadd.s32 %v2840, 3
    %v2845 = vand.u32 %v2844, 3
    %vm2846 = vcmp.lt.s32.totalorder %v2845, 2
    %vm2847 = vcmp.eq.s32.totalorder %v2845, 0
    %v2848 = vxor.u32 %v2842, 2147483648
    %v2849 = vsel %vm2847, %v2841, %v2848
    %vm2850 = vcmp.eq.s32.totalorder %v2845, 2
    %v2851 = vxor.u32 %v2841, 2147483648
    %v2852 = vsel %vm2850, %v2851, %v2842
    %v2853 = vsel %vm2846, %v2849, %v2852
    %v2854 = vsel %vm2843, nan, %v2853
    %v2855 = vand.u32 2147483647, %v2126
    %vm2856 = vcmp.le.f32.partialorder %v2855, 0.7853982
    %vm2857 = vcmp.lt.s32.totalorder %v2126, 0
    %v2858 = vand.u32 %v2126, 2139095040
    %v2859 = vshrl.u32 %v2858, 23
    %v2860 = vsub.s32 %v2859, 127
    %v2861 = vand.u32 2147483647, %v2126
    %v2862 = vand.u32 %v2861, 8388607
    %v2863 = vor.u32 %v2862, 8388608
    %v2864 = vsub.s32 0, %v2863
    %v2865 = vadd.s32 %v2860, 1
    %vm2866 = vcmp.gt.s32.totalorder %v2865, 0
    %v2867 = vsel %vm2866, %v2865, 0
    %v2868 = vshrl.u32 %v2867, 5
    %v2869 = vand.u32 %v2867, 31
    %v2870 = vsub.s32 32, %v2869
    %v2871 = vshrl.u32 683565275, %v2870
    %v2872 = vshll.u32 683565275, %v2869
    %v2873 = vshrl.u32 2475754826, %v2870
    %v2874 = vor.u32 %v2872, %v2873
    %v2875 = vshll.u32 2475754826, %v2869
    %v2876 = vshrl.u32 2131351028, %v2870
    %v2877 = vor.u32 %v2875, %v2876
    %v2878 = vshll.u32 2131351028, %v2869
    %v2879 = vshrl.u32 2102212464, %v2870
    %v2880 = vor.u32 %v2878, %v2879
    %v2881 = vshll.u32 2102212464, %v2869
    %v2882 = vshrl.u32 920167782, %v2870
    %v2883 = vor.u32 %v2881, %v2882
    %v2884 = vshll.u32 920167782, %v2869
    %v2885 = vshrl.u32 1326507024, %v2870
    %v2886 = vor.u32 %v2884, %v2885
    %vm2887 = vcmp.lt.s32.totalorder %v2868, 1
    %vm2888 = vcmp.lt.s32.totalorder %v2868, 2
    %vm2889 = vcmp.lt.s32.totalorder %v2868, 3
    %vm2890 = vcmp.lt.s32.totalorder %v2868, 4
    %v2891 = vsel %vm2887, %v2871, %v2874
    %v2892 = vsel %vm2890, %v2880, 2102212464
    %v2893 = vsel %vm2889, %v2877, %v2892
    %v2894 = vsel %vm2888, %v2891, %v2893
    %v2895 = vsel %vm2887, %v2874, %v2877
    %v2896 = vsel %vm2890, %v2883, 920167782
    %v2897 = vsel %vm2889, %v2880, %v2896
    %v2898 = vsel %vm2888, %v2895, %v2897
    %v2899 = vsel %vm2887, %v2877, %v2880
    %v2900 = vsel %vm2890, %v2886, 1326507024
    %v2901 = vsel %vm2889, %v2883, %v2900
    %v2902 = vsel %vm2888, %v2899, %v2901
    %v2903 = vshll.u32 %v2863, 8
    %v2904 = vmul.u32.u64.compose %v2903, %v2902
    %v2905 = vextract.low.u32 %v2904
    %v2906 = vextract.high.u32 %v2904
    %v2907 = vmul.u32.u64.compose %v2903, %v2898
    %v2908 = vextract.low.u32 %v2907
    %v2909 = vextract.high.u32 %v2907
    %v2910 = vmul.u32 %v2903, %v2894
    %v2911 = vadd.s32 %v2906, %v2908
    %vm2912 = vc.u32 %v2906, %v2908
    %v2913 = vadd.s32 %v2909, 1
    %v2914 = vsel %vm2912, %v2913, %v2909
    %v2915 = vadd.s32 %v2910, %v2914
    %v2916 = vadd.s32 %v2915, 536870912
    %v2917 = vshrl.u32 %v2916, 30
    %v2918 = vshll.u32 %v2917, 30
    %v2919 = vsub.s32 %v2915, %v2918
    %vm2920 = vcmp.lt.s32.totalorder %v2919, 0
    %v2921 = vsub.s32 0, %v2919
    %v2922 = vsel %vm2920, %v2921, %v2919
    %v2923 = vclz %v2922
    %v2924 = vsub.s32 %v2923, 2
    %vm2925 = vcmp.gt.s32.totalorder 0, %v2924
    %v2926 = vsel %vm2925, 0, %v2924
    %v2927 = vsub.s32 32, %v2926
    %v2928 = vshll.u32 %v2919, %v2926
    %v2929 = vshrl.u32 %v2911, %v2927
    %v2930 = vor.u32 %v2928, %v2929
    %v2931 = vsub.s32 4294967266, %v2926
    %v2932 = vadd.s32 %v2931, 127
    %v2933 = vshll.u32 %v2932, 23
    %v2934 = vor.u32 4788187, %v2933
    %v2935 = vand.u32 2147483647, %v2934
    %v2937 = vcvt.s32.f32 %v2930
    %v2938 = vmul.f32 %v2937, %v2935
    %v2939 = vxor.u32 %v2938, 2147483648
    %v2940 = vsel %vm2857, %v2939, %v2938
    %v2941 = vsub.s32 4, %v2917
    %v2942 = vsel %vm2857, %v2941, %v2917
    %v2943 = vsel %vm2856, %v2126, %v2940
    %v2944 = vsel %vm2856, 0, %v2942
    %v2945 = vcosq.f32.pop %v2943
    %v2946 = vsinq.f32.pop %v2943
    %vm2947 = vweird.f32 %v2126
    %v2948 = vadd.s32 %v2944, 3
    %v2949 = vand.u32 %v2948, 3
    %vm2950 = vcmp.lt.s32.totalorder %v2949, 2
    %vm2951 = vcmp.eq.s32.totalorder %v2949, 0
    %v2952 = vxor.u32 %v2946, 2147483648
    %v2953 = vsel %vm2951, %v2945, %v2952
    %vm2954 = vcmp.eq.s32.totalorder %v2949, 2
    %v2955 = vxor.u32 %v2945, 2147483648
    %v2956 = vsel %vm2954, %v2955, %v2946
    %v2957 = vsel %vm2950, %v2953, %v2956
    %v2958 = vsel %vm2947, nan, %v2957
    %v2959 = vld [vmem:[%s5] sm:$0x3]
    %v2960 = vpack.c.bf16 %v2438, %v2230
    %v2961 = vpack.c.bf16 %v2542, %v2334
    %v2962 = vpack.c.bf16 %v2854, %v2646
    %v2963 = vpack.c.bf16 %v2958, %v2750
    %v2964 = vld [vmem:[%s6] sm:$0x7]
    %2966 = vset.pattern.permute.xlu0 0
    %2967 = vperm.xlu0 %2966, %v2964
    %v2968 = vpop.permute.xlu0 %2967
    %v2971 = vsel %vm1068, %v2959, 0
    %2973 = vmatprep.subr.bf16.mxu0 %v2961
    %2974 = vmatpush1.bf16.msra.mxu0 %v2960
    %2975 = vmatprep.subr.bf16.mxu0 %v2963
    %2976 = vmatpush1.bf16.msra.mxu0 %v2962
    %2977 = vmatprep.subr.bf16.mxu0 0
    %2978 = vmatpush1.bf16.msra.mxu0 0
    %2979 = vmatprep.subr.bf16.mxu0 0
    %2980 = vmatpush1.bf16.msra.mxu0 0
    %2981 = vmatprep.subr.bf16.mxu0 0
    %2982 = vmatpush1.bf16.msra.mxu0 0
    %2983 = vmatprep.subr.bf16.mxu0 0
    %2984 = vmatpush1.bf16.msra.mxu0 0
    %2985 = vmatprep.subr.bf16.mxu0 0
    %2986 = vmatpush1.bf16.msra.mxu0 0
    %2987 = vmatprep.subr.bf16.mxu0 0
    %2988 = vmatpush1.bf16.msra.mxu0 0
    %2989 = vmatprep.subr.bf16.mxu0 0
    %2990 = vmatpush1.bf16.msra.mxu0 0
    %2991 = vmatprep.subr.bf16.mxu0 0
    %2992 = vmatpush1.bf16.msra.mxu0 0
    %2993 = vmatprep.subr.bf16.mxu0 0
    %2994 = vmatpush1.bf16.msra.mxu0 0
    %2995 = vmatprep.subr.bf16.mxu0 0
    %2996 = vmatpush1.bf16.msra.mxu0 0
    %2997 = vmatprep.subr.bf16.mxu0 0
    %2998 = vmatpush1.bf16.msra.mxu0 0
    %2999 = vmatprep.subr.bf16.mxu0 0
    %3000 = vmatpush1.bf16.msra.mxu0 0
    %3001 = vmatprep.subr.bf16.mxu0 0
    %3002 = vmatpush1.bf16.msra.mxu0 0
    %3003 = vmatprep.subr.bf16.mxu0 0
    %3004 = vmatpush1.bf16.msra.mxu0 0
    %3005 = vmatprep.mubr.bf16.mxu0 0
    %3006 = vmatmul.mubr.bf16.gmra.mrb[0].mxu0 %v2971
    %v3007 = vpop.f32.mrb[0].mxu0
    %v3008 = vadd.f32 %v2968, %v3007
    %v3009 = vpop.f32.mrb[0].mxu0
    %v3010 = vadd.f32 %v2968, %v3009
    %v3011 = vpop.f32.mrb[0].mxu0
    %v3012 = vpop.f32.mrb[0].mxu0
    %3013 = vdwg.mxu0
    %v3016 = vcombine.low %v3008, %v3010
    %3018 = vst [vmem:[#allocation2] sm:$0x77] %v3016
    // Predicated region
    $region30: #{tpu_custom_call.1} parent=1 // pred_check
      _
    $region31: #{tpu_custom_call.1} parent=1 // pred_check_branch
      %3020 = sbr.rel (0) target = $region33
    $region32: #{tpu_custom_call.1} parent=1 // pred_region
      %s3022 = ssub.s32 128, 128
      %3023 = vsyncadd [#allocation3], %s3022
      %s3025 = sshll.u32 [#allocation2], 4
      %s3026 = int_to_ptr.vmem [resolvable:$true] %s3025
      %3028 = dma.vmem_to_hbm [thread:$0]  %s3026, 128, %s7, [#allocation3]
    $region33: #{tpu_custom_call.1} parent=1 // pred_fallthru
      _
    // Predicated region
    $region34: #{tpu_custom_call.1} parent=1 // pred_check
      _
    $region35: #{tpu_custom_call.1} parent=1 // pred_check_branch
      %3030 = sbr.rel (0) target = $region37
    $region36: #{tpu_custom_call.1} parent=1 // pred_region
      %3031 = dma.done [#allocation3], 128
    $region37: #{tpu_custom_call.1} parent=1 // pred_fallthru
      _
    %3032 = vsyncpa [#allocation3], 1

</llo_original>
